<compile_context>
chip_gen: v5e
topology: v5e:2x2
jax: 0.10.0
libtpu: 0.0.40
codegen_flags: <defaults>
</compile_context>

<pallas_src>
import functools

import numpy as np
import jax
import jax.numpy as jnp
from jax import lax
from jax.experimental import pallas as pl
from jax.experimental.pallas import tpu as pltpu

WINDOW_SIZE = 7          # SSIM(window_size=7) as used inside DepthWithSmoothnessLoss
SIGMA = 1.5
C1 = 0.01 ** 2
C2 = 0.03 ** 2
PAD = WINDOW_SIZE // 2


def _gaussian_1d(window_size: int, sigma: float) -> np.ndarray:
    coords = np.arange(window_size, dtype=np.float64)
    center = window_size // 2
    g = np.exp(-((coords - center) ** 2) / (2.0 * sigma ** 2))
    return (g / g.sum()).astype(np.float32)


_G1D = _gaussian_1d(WINDOW_SIZE, SIGMA)          # (7,), sums to 1, symmetric


@functools.lru_cache(maxsize=None)
def _banded_np(n: int, blocks: int = 1) -> np.ndarray:
    """Banded matrix M with M[p, j] = g[p - j + PAD].

    X @ M  == zero-padded 7-tap Gaussian convolution of each row of X.
    M @ X  == the same along columns (g is symmetric, so M is symmetric).
    `blocks` > 1 builds a block-diagonal version for `blocks` images packed
    side-by-side along the lane axis (no cross-image leakage)."""
    base = np.zeros((n, n), np.float32)
    for j in range(n):
        for k in range(WINDOW_SIZE):
            p = j + k - PAD
            if 0 <= p < n:
                base[p, j] = _G1D[k]
    if blocks == 1:
        return base
    out = np.zeros((blocks * n, blocks * n), np.float32)
    for b in range(blocks):
        out[b * n:(b + 1) * n, b * n:(b + 1) * n] = base
    return out


@functools.lru_cache(maxsize=1)
def _vmem_capacity_bytes() -> int:
    try:
        return int(pltpu.get_tpu_info().vmem_capacity_bytes)
    except Exception:
        return 128 * 1024 * 1024                 # v5e/v6e default; v7x has 64 MiB


def _vmem_limit(request_bytes: int) -> int:
    cap = _vmem_capacity_bytes()
    return int(max(16 << 20, min(int(cap * 0.85), request_bytes)))


# -----------------------------------------------------------------------------
# Kernel 1: full path (H <= 128): L1 + SSIM (+ optional edge-aware smoothness)
# for ALL scales fused into one launch.  The Gaussian is applied on the MXU.
# -----------------------------------------------------------------------------
def _depth_ssim_kernel(*refs, H, W, Wk, S, compute_smooth):
    gr_ref, gc_ref = refs[0], refs[1]
    pred_refs = refs[2:2 + S]
    targ_ref = refs[2 + S]
    nxt = 3 + S
    rgb_ref = None
    if compute_smooth:
        rgb_ref = refs[nxt]
        nxt += 1
    out_ref = refs[nxt]

    gr = gr_ref[...]                      # (Wk, Wk) block-diagonal banded Gaussian
    gc = gc_ref[...]                      # (H, H)  banded Gaussian

    def gauss7x7(img):                    # zero-padded 7x7 Gaussian conv on the MXU
        r = jnp.dot(img, gr, preferred_element_type=jnp.float32)
        return jnp.dot(gc, r, preferred_element_type=jnp.float32)

    # Target statistics (and rgb gradient weights) are shared across all scales.
    t = targ_ref[0, 0].astype(jnp.float32)               # (H, Wk)
    mu2 = gauss7x7(t)
    mu2_sq = mu2 * mu2
    sigma2_sq = gauss7x7(t * t) - mu2_sq

    if compute_smooth:
        gray = jnp.mean(rgb_ref[0].astype(jnp.float32), axis=0)       # (H, Wk)
        wx = jnp.exp(-jnp.abs(gray[:, :-1] - gray[:, 1:]) * 10.0)     # (H, Wk-1)
        wy = jnp.exp(-jnp.abs(gray[:-1, :] - gray[1:, :]) * 10.0)     # (H-1, Wk)
        if Wk > W:       # zero the cross-image columns introduced by lane packing
            col = lax.broadcasted_iota(jnp.int32, (H, Wk - 1), 1)
            for m in range(1, Wk // W):
                wx = jnp.where(col == (m * W - 1), 0.0, wx)

    lane = lax.broadcasted_iota(jnp.int32, (8, 128), 1)
    sub = lax.broadcasted_iota(jnp.int32, (8, 128), 0)
    row0 = sub == 0
    tile = jnp.zeros((8, 128), jnp.float32)

    for s in range(S):                    # static unroll over scales (one launch)
        x = pred_refs[s][0, 0].astype(jnp.float32)        # (H, Wk)

        l1 = jnp.sum(jnp.abs(x - t))

        mu1 = gauss7x7(x)
        mu1_sq = mu1 * mu1
        mu1_mu2 = mu1 * mu2
        sigma1_sq = gauss7x7(x * x) - mu1_sq
        sigma12 = gauss7x7(x * t) - mu1_mu2
        ssim_map = ((2.0 * mu1_mu2 + C1) * (2.0 * sigma12 + C2)) / (
            (mu1_sq + mu2_sq + C1) * (sigma1_sq + sigma2_sq + C2))
        ssim = jnp.sum(ssim_map)

        base = 4 * s                      # lane-dense per-scale partial sums
        tile = tile + jnp.where(row0 & (lane == base + 0), l1, 0.0)
        tile = tile + jnp.where(row0 & (lane == base + 1), ssim, 0.0)
        if compute_smooth:
            ddx = jnp.abs(x[:, :-1] - x[:, 1:])
            ddy = jnp.abs(x[:-1, :] - x[1:, :])
            sx = jnp.sum(ddx * wx)
            sy = jnp.sum(ddy * wy)
            tile = tile + jnp.where(row0 & (lane == base + 2), sx, 0.0)
            tile = tile + jnp.where(row0 & (lane == base + 3), sy, 0.0)

    out_ref[0] = tile


def _pack_lane(x, pack):
    """(B, C, H, W) -> (B//pack, C, H, pack*W): pack batch images side-by-side
    along the lane axis (only used when W < 128, so the copy is tiny)."""
    if pack == 1:
        return x
    B, C, H, W = x.shape
    g = B // pack
    x = x.reshape(g, pack, C, H, W)
    x = jnp.transpose(x, (0, 2, 3, 1, 4))
    return x.reshape(g, C, H, pack * W)


def _ssim_path_losses(preds, target, rgb, base_weight, smoothness_weight):
    """Per-scale DepthWithSmoothnessLoss for H <= 128 — one fused pallas_call."""
    B, C, H, W = target.shape
    S = len(preds)
    compute_smooth = rgb is not None

    # Lane packing: put `pack` batch images side-by-side so the last dim is ~128.
    pack = 1
    for d in range(2, B + 1):
        if B % d == 0 and d * W <= 128:
            pack = d
    G = B // pack
    Wk = pack * W

    gr = jnp.asarray(_banded_np(W, pack))            # (Wk, Wk)
    gc = jnp.asarray(_banded_np(H, 1))               # (H, H)

    args = [gr, gc] + [_pack_lane(p, pack) for p in preds] + [_pack_lane(target, pack)]
    img_spec = pl.BlockSpec((1, 1, H, Wk), lambda g: (g, 0, 0, 0))
    in_specs = [pl.BlockSpec((Wk, Wk), lambda g: (0, 0)),
                pl.BlockSpec((H, H), lambda g: (0, 0))] + [img_spec] * (S + 1)
    if compute_smooth:
        Crgb = rgb.shape[1]
        args.append(_pack_lane(rgb, pack))
        in_specs.append(pl.BlockSpec((1, Crgb, H, Wk), lambda g: (g, 0, 0, 0)))

    # VMEM request: double-buffered inputs + in-kernel f32 intermediates + margin.
    img_bytes = H * Wk * 4
    request = (2 * (Wk * Wk + H * H) * 4
               + 2 * (S + 1) * img_bytes
               + (2 * 3 * img_bytes if compute_smooth else 0)
               + (16 + 6 * S) * img_bytes
               + (8 << 20))
    # TODO(synk): for very wide images on v7x (64 MiB VMEM) add a W-tiling grid axis
    # with a 6-column halo, which would also feed both TensorCores when G == 1.

    kernel = functools.partial(_depth_ssim_kernel, H=H, W=W, Wk=Wk, S=S,
                               compute_smooth=compute_smooth)
    out = pl.pallas_call(
        kernel,
        out_shape=jax.ShapeDtypeStruct((G, 8, 128), jnp.float32),
        grid_spec=pltpu.PrefetchScalarGridSpec(
            num_scalar_prefetch=0,
            grid=(G,),
            in_specs=in_specs,
            out_specs=pl.BlockSpec((1, 8, 128), lambda g: (g, 0, 0)),
        ),
        compiler_params=pltpu.CompilerParams(
            dimension_semantics=("parallel",),
            vmem_limit_bytes=_vmem_limit(request)),
    )(*args)

    sums = jnp.sum(out, axis=(0, 1))                 # (128,) lane-dense partials
    n = B * C * H * W
    losses = []
    for s in range(S):
        l1_loss = sums[4 * s + 0] / n
        ssim_loss = 1.0 - sums[4 * s + 1] / n
        total = base_weight * (0.8 * l1_loss + 0.2 * ssim_loss)
        if compute_smooth:
            smooth = (sums[4 * s + 2] / (B * C * H * (W - 1))
                      + sums[4 * s + 3] / (B * C * (H - 1) * W))
            total = total + jnp.where(smooth > 0, smoothness_weight * smooth, 0.0)
        losses.append(total)
    return losses


# -----------------------------------------------------------------------------
# Kernel 2: simplified path (H > 128): mean |pred_s - target| for all scales in
# one row-tiled reduction (target read from HBM only once).
# -----------------------------------------------------------------------------
def _l1_multi_kernel(*refs, S, rem):
    pred_refs = refs[:S]
    targ_ref = refs[S]
    out_ref = refs[S + 1]

    t = targ_ref[...].astype(jnp.float32)
    diffs = [jnp.abs(pred_refs[s][...].astype(jnp.float32) - t) for s in range(S)]

    lane = lax.broadcasted_iota(jnp.int32, (8, 128), 1)
    sub = lax.broadcasted_iota(jnp.int32, (8, 128), 0)
    row0 = sub == 0

    def write(sums):
        tile = jnp.zeros((8, 128), jnp.float32)
        for s, v in enumerate(sums):
            tile = tile + jnp.where(row0 & (lane == s), v, 0.0)
        out_ref[0] = tile

    write([jnp.sum(d) for d in diffs])

    if rem:      # only the last tile runs the masked (OOB rows) path at runtime
        @pl.when(pl.program_id(0) == pl.num_programs(0) - 1)
        def _():
            rows = lax.broadcasted_iota(jnp.int32, diffs[0].shape, 0)
            valid = rows < rem
            write([jnp.sum(jnp.where(valid, d, 0.0)) for d in diffs])


def _l1_means(preds, target, *, max_tile_rows=None):
    """Per-scale mean(|pred - target|) via one fused row-tiled Pallas reduction."""
    B, C, H, W = target.shape
    S = len(preds)
    N = B * C * H * W

    # Lane-dense 2-D layout for the reduction.
    R, Wl = B * C * H, W
    if Wl < 128:
        for cand in (1024, 512, 256, 128):
            if N % cand == 0:
                R, Wl = N // cand, cand
                break
    p2 = [p.reshape(R, Wl) for p in preds]
    t2 = target.reshape(R, Wl)

    # Generation-aware tile size: as large as comfortably fits double-buffered.
    budget = int(_vmem_capacity_bytes() * 0.8) - (8 << 20)
    per_block = max(1 << 20, min(12 << 20, budget // (2 * (S + 1))))
    tr = max(8, (per_block // (Wl * 4)) // 8 * 8)
    if max_tile_rows is not None:
        tr = min(tr, max(8, (max_tile_rows // 8) * 8))
    if tr >= R:
        tr = R
    n_tiles = int(pl.cdiv(R, tr))
    rem = R % tr

    kernel = functools.partial(_l1_multi_kernel, S=S, rem=rem)
    in_spec = pl.BlockSpec((tr, Wl), lambda i: (i, 0))
    request = 2 * (S + 1) * tr * Wl * 4 + (8 << 20)
    out = pl.pallas_call(
        kernel,
        out_shape=jax.ShapeDtypeStruct((n_tiles, 8, 128), jnp.float32),
        grid_spec=pltpu.PrefetchScalarGridSpec(
            num_scalar_prefetch=0,
            grid=(n_tiles,),
            in_specs=[in_spec] * (S + 1),
            out_specs=pl.BlockSpec((1, 8, 128), lambda i: (i, 0, 0)),
        ),
        compiler_params=pltpu.CompilerParams(
            dimension_semantics=("parallel",),
            vmem_limit_bytes=_vmem_limit(request)),
    )(*p2, t2)
    sums = jnp.sum(out, axis=(0, 1))                 # (128,)
    return [sums[s] / N for s in range(S)]


# -----------------------------------------------------------------------------
# Loss wrappers (forward semantics of the PyTorch module)
# -----------------------------------------------------------------------------
def depth_with_smoothness_loss(pred, target, rgb=None,
                               base_weight=0.85, smoothness_weight=0.15):
    """DepthWithSmoothnessLoss.forward for one (already target-sized) prediction."""
    B, C, H, W = pred.shape
    assert C == 1, "depth maps are single-channel"
    if H > 128:      # simplified path: L1 only, SSIM/smoothness skipped entirely
        return base_weight * _l1_means([pred], target)[0]
    return _ssim_path_losses([pred], target, rgb, base_weight, smoothness_weight)[0]


def multi_scale_loss(pred, target, rgb=None, weights=(0.7, 0.2, 0.1),
                     base_weight=0.85, smoothness_weight=0.15):
    """MultiScaleLoss.forward — all scales fused into a single pallas_call."""
    if not isinstance(pred, (list, tuple)):
        return depth_with_smoothness_loss(pred, target, rgb,
                                          base_weight, smoothness_weight)
    weights = list(weights)
    if len(weights) != len(pred):
        weights = [1.0 / len(pred)] * len(pred)
    resized = []
    for p in pred:
        if p.shape[2:] != target.shape[2:]:
            # bilinear, half-pixel centers == F.interpolate(align_corners=False)
            p = jax.image.resize(p, p.shape[:2] + tuple(target.shape[2:]),
                                 method="bilinear")
        resized.append(p)
    H = target.shape[2]
    if H > 128:
        losses = [base_weight * m for m in _l1_means(resized, target)]
    else:
        losses = _ssim_path_losses(resized, target, rgb,
                                   base_weight, smoothness_weight)
    total = jnp.float32(0.0)
    for w, l in zip(weights, losses):
        total = total + w * l
    return total


if __name__ == "__main__":
    key = jax.random.PRNGKey(0)
    k1, k2, k3, k4, k5, k6, k7 = jax.random.split(key, 7)

    B, H, W = 2, 16, 16
    # multi-scale predictions (full / half / quarter resolution), depth-like positives
    pred_full = jax.random.uniform(k1, (B, 1, H, W), jnp.float32, 0.1, 1.0)
    pred_half = jax.random.uniform(k2, (B, 1, H // 2, W // 2), jnp.float32, 0.1, 1.0)
    pred_quarter = jax.random.uniform(k3, (B, 1, H // 4, W // 4), jnp.float32, 0.1, 1.0)
    target = jax.random.uniform(k4, (B, 1, H, W), jnp.float32, 0.1, 1.0)
    rgb = jax.random.uniform(k5, (B, 3, H, W), jnp.float32, 0.0, 1.0)

    # Multi-scale SSIM + smoothness path (single fused pallas_call for all scales).
    loss = multi_scale_loss([pred_full, pred_half, pred_quarter], target, rgb)
    loss = jax.block_until_ready(loss)
    assert jnp.isfinite(loss), "multi-scale loss is not finite"

    # Single-scale call without rgb (no smoothness branch traced at all).
    loss_ns = jax.block_until_ready(depth_with_smoothness_loss(pred_full, target))
    assert jnp.isfinite(loss_ns), "no-rgb loss is not finite"

    # Simplified (H > 128) L1-only path; also force a multi-tile run so the
    # last-tile OOB mask is exercised and cross-checked.
    Hs, Ws = 160, 128
    pred_big = jax.random.uniform(k6, (B, 1, Hs, Ws), jnp.float32, 0.1, 1.0)
    targ_big = jax.random.uniform(k7, (B, 1, Hs, Ws), jnp.float32, 0.1, 1.0)
    loss_big = jax.block_until_ready(
        depth_with_smoothness_loss(pred_big, targ_big, rgb=None))
    assert jnp.isfinite(loss_big), "simplified loss is not finite"
    tiled = jax.block_until_ready(
        0.85 * _l1_means([pred_big], targ_big, max_tile_rows=48)[0])
    assert jnp.allclose(loss_big, tiled, rtol=1e-4, atol=1e-6), \
        "tiled L1 reduction mismatch"

    print("KERNEL_OK")
</pallas_src>

<mosaic_0001>
module attributes {stable_mosaic.version = 11 : i64} {
  func.func @_depth_ssim_kernel(%arg0: i32, %arg1: memref<32x32xf32, #tpu.memory_space<vmem>>, %arg2: memref<16x16xf32, #tpu.memory_space<vmem>>, %arg3: memref<1x1x16x32xf32, #tpu.memory_space<vmem>>, %arg4: memref<1x1x16x32xf32, #tpu.memory_space<vmem>>, %arg5: memref<1x1x16x32xf32, #tpu.memory_space<vmem>>, %arg6: memref<1x1x16x32xf32, #tpu.memory_space<vmem>>, %arg7: memref<1x3x16x32xf32, #tpu.memory_space<vmem>>, %arg8: memref<1x8x128xf32, #tpu.memory_space<vmem>>) attributes {dimension_semantics = [#tpu.dimension_semantics<parallel>], iteration_bounds = array<i64: 1>, scalar_prefetch = 0 : i64, scratch_operands = 0 : i64, tpu.core_type = #tpu.core_type<tc>, window_params = [{pipeline_mode = #tpu.pipeline_mode<synchronous>, transform_indices = @transform_0, window_bounds = array<i64: 32, 32>}, {pipeline_mode = #tpu.pipeline_mode<synchronous>, transform_indices = @transform_1, window_bounds = array<i64: 16, 16>}, {transform_indices = @transform_2, window_bounds = array<i64: 1, 1, 16, 32>}, {transform_indices = @transform_3, window_bounds = array<i64: 1, 1, 16, 32>}, {transform_indices = @transform_4, window_bounds = array<i64: 1, 1, 16, 32>}, {transform_indices = @transform_5, window_bounds = array<i64: 1, 1, 16, 32>}, {transform_indices = @transform_6, window_bounds = array<i64: 1, 3, 16, 32>}, {transform_indices = @transform_7, window_bounds = array<i64: 1, 8, 128>}]} {
    %c0 = arith.constant 0 : index
    %c0_0 = arith.constant 0 : index
    %0 = vector.load %arg1[%c0, %c0_0] : memref<32x32xf32, #tpu.memory_space<vmem>>, vector<32x32xf32>
    %c0_1 = arith.constant 0 : index
    %c0_2 = arith.constant 0 : index
    %1 = vector.load %arg2[%c0_1, %c0_2] : memref<16x16xf32, #tpu.memory_space<vmem>>, vector<16x16xf32>
    %c0_3 = arith.constant 0 : index
    %c0_4 = arith.constant 0 : index
    %c0_5 = arith.constant 0 : index
    %c0_6 = arith.constant 0 : index
    %2 = vector.load %arg6[%c0_3, %c0_4, %c0_5, %c0_6] : memref<1x1x16x32xf32, #tpu.memory_space<vmem>>, vector<1x1x16x32xf32>
    %3 = vector.shape_cast %2 : vector<1x1x16x32xf32> to vector<16x32xf32>
    %cst = arith.constant dense<0.000000e+00> : vector<16x32xf32>
    %4 = tpu.matmul %3, %0, %cst {dimension_numbers = #tpu.dot_dimension_numbers<[1], [0], [0], [1], [0, 0, 1, 1], [], []>} : vector<16x32xf32>, vector<32x32xf32>, vector<16x32xf32> -> vector<16x32xf32>
    %cst_7 = arith.constant dense<0.000000e+00> : vector<16x32xf32>
    %5 = tpu.matmul %1, %4, %cst_7 {dimension_numbers = #tpu.dot_dimension_numbers<[1], [0], [0], [1], [0, 0, 1, 1], [], []>} : vector<16x16xf32>, vector<16x32xf32>, vector<16x32xf32> -> vector<16x32xf32>
    %6 = arith.mulf %5, %5 : vector<16x32xf32>
    %7 = arith.mulf %3, %3 : vector<16x32xf32>
    %cst_8 = arith.constant dense<0.000000e+00> : vector<16x32xf32>
    %8 = tpu.matmul %7, %0, %cst_8 {dimension_numbers = #tpu.dot_dimension_numbers<[1], [0], [0], [1], [0, 0, 1, 1], [], []>} : vector<16x32xf32>, vector<32x32xf32>, vector<16x32xf32> -> vector<16x32xf32>
    %cst_9 = arith.constant dense<0.000000e+00> : vector<16x32xf32>
    %9 = tpu.matmul %1, %8, %cst_9 {dimension_numbers = #tpu.dot_dimension_numbers<[1], [0], [0], [1], [0, 0, 1, 1], [], []>} : vector<16x16xf32>, vector<16x32xf32>, vector<16x32xf32> -> vector<16x32xf32>
    %10 = arith.subf %9, %6 : vector<16x32xf32>
    %c0_10 = arith.constant 0 : index
    %c0_11 = arith.constant 0 : index
    %c0_12 = arith.constant 0 : index
    %c0_13 = arith.constant 0 : index
    %11 = vector.load %arg7[%c0_10, %c0_11, %c0_12, %c0_13] : memref<1x3x16x32xf32, #tpu.memory_space<vmem>>, vector<1x3x16x32xf32>
    %12 = vector.shape_cast %11 : vector<1x3x16x32xf32> to vector<3x16x32xf32>
    %cst_14 = arith.constant dense<0.000000e+00> : vector<16x32xf32>
    %13 = vector.multi_reduction <add>, %12, %cst_14 [0] : vector<3x16x32xf32> to vector<16x32xf32>
    %cst_15 = arith.constant 3.000000e+00 : f32
    %14 = vector.broadcast %cst_15 : f32 to vector<16x32xf32>
    %15 = arith.divf %13, %14 : vector<16x32xf32>
    %16 = vector.extract_strided_slice %15 {offsets = [0, 0], sizes = [16, 31], strides = [1, 1]} : vector<16x32xf32> to vector<16x31xf32>
    %17 = vector.extract_strided_slice %15 {offsets = [0, 1], sizes = [16, 31], strides = [1, 1]} : vector<16x32xf32> to vector<16x31xf32>
    %18 = arith.subf %16, %17 : vector<16x31xf32>
    %19 = math.absf %18 : vector<16x31xf32>
    %cst_16 = arith.constant 0.000000e+00 : f32
    %20 = vector.broadcast %cst_16 : f32 to vector<16x31xf32>
    %21 = arith.subf %20, %19 : vector<16x31xf32>
    %cst_17 = arith.constant 1.000000e+01 : f32
    %22 = vector.broadcast %cst_17 : f32 to vector<16x31xf32>
    %23 = arith.mulf %21, %22 : vector<16x31xf32>
    %24 = math.exp %23 : vector<16x31xf32>
    %25 = vector.extract_strided_slice %15 {offsets = [0, 0], sizes = [15, 32], strides = [1, 1]} : vector<16x32xf32> to vector<15x32xf32>
    %26 = vector.extract_strided_slice %15 {offsets = [1, 0], sizes = [15, 32], strides = [1, 1]} : vector<16x32xf32> to vector<15x32xf32>
    %27 = arith.subf %25, %26 : vector<15x32xf32>
    %28 = math.absf %27 : vector<15x32xf32>
    %cst_18 = arith.constant 0.000000e+00 : f32
    %29 = vector.broadcast %cst_18 : f32 to vector<15x32xf32>
    %30 = arith.subf %29, %28 : vector<15x32xf32>
    %cst_19 = arith.constant 1.000000e+01 : f32
    %31 = vector.broadcast %cst_19 : f32 to vector<15x32xf32>
    %32 = arith.mulf %30, %31 : vector<15x32xf32>
    %33 = math.exp %32 : vector<15x32xf32>
    %34 = tpu.iota {dimensions = array<i32: 1>} : vector<16x31xi32>
    %c15_i32 = arith.constant 15 : i32
    %35 = vector.broadcast %c15_i32 : i32 to vector<16x31xi32>
    %36 = arith.cmpi eq, %34, %35 : vector<16x31xi32>
    %cst_20 = arith.constant 0.000000e+00 : f32
    %37 = vector.broadcast %cst_20 : f32 to vector<16x31xf32>
    %38 = arith.select %36, %37, %24 : vector<16x31xi1>, vector<16x31xf32>
    %39 = tpu.iota {dimensions = array<i32: 1>} : vector<8x128xi32>
    %40 = tpu.iota {dimensions = array<i32: 0>} : vector<8x128xi32>
    %c0_i32 = arith.constant 0 : i32
    %41 = vector.broadcast %c0_i32 : i32 to vector<8x128xi32>
    %42 = arith.cmpi eq, %40, %41 : vector<8x128xi32>
    %cst_21 = arith.constant 0.000000e+00 : f32
    %43 = vector.broadcast %cst_21 : f32 to vector<8x128xf32>
    %c0_22 = arith.constant 0 : index
    %c0_23 = arith.constant 0 : index
    %c0_24 = arith.constant 0 : index
    %c0_25 = arith.constant 0 : index
    %44 = vector.load %arg3[%c0_22, %c0_23, %c0_24, %c0_25] : memref<1x1x16x32xf32, #tpu.memory_space<vmem>>, vector<1x1x16x32xf32>
    %45 = vector.shape_cast %44 : vector<1x1x16x32xf32> to vector<16x32xf32>
    %46 = arith.subf %45, %3 : vector<16x32xf32>
    %47 = math.absf %46 : vector<16x32xf32>
    %48 = vector.shape_cast %47 : vector<16x32xf32> to vector<1x16x32xf32>
    %cst_26 = arith.constant dense<0.000000e+00> : vector<1xf32>
    %49 = vector.multi_reduction <add>, %48, %cst_26 [1, 2] : vector<1x16x32xf32> to vector<1xf32>
    %50 = vector.shape_cast %49 : vector<1xf32> to vector<1x1x1xf32>
    %51 = vector.extract %50[0, 0, 0] : f32 from vector<1x1x1xf32>
    %cst_27 = arith.constant dense<0.000000e+00> : vector<16x32xf32>
    %52 = tpu.matmul %45, %0, %cst_27 {dimension_numbers = #tpu.dot_dimension_numbers<[1], [0], [0], [1], [0, 0, 1, 1], [], []>} : vector<16x32xf32>, vector<32x32xf32>, vector<16x32xf32> -> vector<16x32xf32>
    %cst_28 = arith.constant dense<0.000000e+00> : vector<16x32xf32>
    %53 = tpu.matmul %1, %52, %cst_28 {dimension_numbers = #tpu.dot_dimension_numbers<[1], [0], [0], [1], [0, 0, 1, 1], [], []>} : vector<16x16xf32>, vector<16x32xf32>, vector<16x32xf32> -> vector<16x32xf32>
    %54 = arith.mulf %53, %53 : vector<16x32xf32>
    %55 = arith.mulf %53, %5 : vector<16x32xf32>
    %56 = arith.mulf %45, %45 : vector<16x32xf32>
    %cst_29 = arith.constant dense<0.000000e+00> : vector<16x32xf32>
    %57 = tpu.matmul %56, %0, %cst_29 {dimension_numbers = #tpu.dot_dimension_numbers<[1], [0], [0], [1], [0, 0, 1, 1], [], []>} : vector<16x32xf32>, vector<32x32xf32>, vector<16x32xf32> -> vector<16x32xf32>
    %cst_30 = arith.constant dense<0.000000e+00> : vector<16x32xf32>
    %58 = tpu.matmul %1, %57, %cst_30 {dimension_numbers = #tpu.dot_dimension_numbers<[1], [0], [0], [1], [0, 0, 1, 1], [], []>} : vector<16x16xf32>, vector<16x32xf32>, vector<16x32xf32> -> vector<16x32xf32>
    %59 = arith.subf %58, %54 : vector<16x32xf32>
    %60 = arith.mulf %45, %3 : vector<16x32xf32>
    %cst_31 = arith.constant dense<0.000000e+00> : vector<16x32xf32>
    %61 = tpu.matmul %60, %0, %cst_31 {dimension_numbers = #tpu.dot_dimension_numbers<[1], [0], [0], [1], [0, 0, 1, 1], [], []>} : vector<16x32xf32>, vector<32x32xf32>, vector<16x32xf32> -> vector<16x32xf32>
    %cst_32 = arith.constant dense<0.000000e+00> : vector<16x32xf32>
    %62 = tpu.matmul %1, %61, %cst_32 {dimension_numbers = #tpu.dot_dimension_numbers<[1], [0], [0], [1], [0, 0, 1, 1], [], []>} : vector<16x16xf32>, vector<16x32xf32>, vector<16x32xf32> -> vector<16x32xf32>
    %63 = arith.subf %62, %55 : vector<16x32xf32>
    %cst_33 = arith.constant 2.000000e+00 : f32
    %64 = vector.broadcast %cst_33 : f32 to vector<16x32xf32>
    %65 = arith.mulf %64, %55 : vector<16x32xf32>
    %cst_34 = arith.constant 9.99999974E-5 : f32
    %66 = vector.broadcast %cst_34 : f32 to vector<16x32xf32>
    %67 = arith.addf %65, %66 : vector<16x32xf32>
    %cst_35 = arith.constant 2.000000e+00 : f32
    %68 = vector.broadcast %cst_35 : f32 to vector<16x32xf32>
    %69 = arith.mulf %68, %63 : vector<16x32xf32>
    %cst_36 = arith.constant 8.99999984E-4 : f32
    %70 = vector.broadcast %cst_36 : f32 to vector<16x32xf32>
    %71 = arith.addf %69, %70 : vector<16x32xf32>
    %72 = arith.mulf %67, %71 : vector<16x32xf32>
    %73 = arith.addf %54, %6 : vector<16x32xf32>
    %cst_37 = arith.constant 9.99999974E-5 : f32
    %74 = vector.broadcast %cst_37 : f32 to vector<16x32xf32>
    %75 = arith.addf %73, %74 : vector<16x32xf32>
    %76 = arith.addf %59, %10 : vector<16x32xf32>
    %cst_38 = arith.constant 8.99999984E-4 : f32
    %77 = vector.broadcast %cst_38 : f32 to vector<16x32xf32>
    %78 = arith.addf %76, %77 : vector<16x32xf32>
    %79 = arith.mulf %75, %78 : vector<16x32xf32>
    %80 = arith.divf %72, %79 : vector<16x32xf32>
    %81 = vector.shape_cast %80 : vector<16x32xf32> to vector<1x16x32xf32>
    %cst_39 = arith.constant dense<0.000000e+00> : vector<1xf32>
    %82 = vector.multi_reduction <add>, %81, %cst_39 [1, 2] : vector<1x16x32xf32> to vector<1xf32>
    %83 = vector.shape_cast %82 : vector<1xf32> to vector<1x1x1xf32>
    %84 = vector.extract %83[0, 0, 0] : f32 from vector<1x1x1xf32>
    %c0_i32_40 = arith.constant 0 : i32
    %85 = vector.broadcast %c0_i32_40 : i32 to vector<8x128xi32>
    %86 = arith.cmpi eq, %39, %85 : vector<8x128xi32>
    %87 = arith.andi %42, %86 : vector<8x128xi1>
    %cst_41 = arith.constant 0.000000e+00 : f32
    %88 = vector.broadcast %51 : f32 to vector<8x128xf32>
    %89 = vector.broadcast %cst_41 : f32 to vector<8x128xf32>
    %90 = arith.select %87, %88, %89 : vector<8x128xi1>, vector<8x128xf32>
    %91 = arith.addf %43, %90 : vector<8x128xf32>
    %c1_i32 = arith.constant 1 : i32
    %92 = vector.broadcast %c1_i32 : i32 to vector<8x128xi32>
    %93 = arith.cmpi eq, %39, %92 : vector<8x128xi32>
    %94 = arith.andi %42, %93 : vector<8x128xi1>
    %cst_42 = arith.constant 0.000000e+00 : f32
    %95 = vector.broadcast %84 : f32 to vector<8x128xf32>
    %96 = vector.broadcast %cst_42 : f32 to vector<8x128xf32>
    %97 = arith.select %94, %95, %96 : vector<8x128xi1>, vector<8x128xf32>
    %98 = arith.addf %91, %97 : vector<8x128xf32>
    %99 = vector.extract_strided_slice %45 {offsets = [0, 0], sizes = [16, 31], strides = [1, 1]} : vector<16x32xf32> to vector<16x31xf32>
    %100 = vector.extract_strided_slice %45 {offsets = [0, 1], sizes = [16, 31], strides = [1, 1]} : vector<16x32xf32> to vector<16x31xf32>
    %101 = arith.subf %99, %100 : vector<16x31xf32>
    %102 = math.absf %101 : vector<16x31xf32>
    %103 = vector.extract_strided_slice %45 {offsets = [0, 0], sizes = [15, 32], strides = [1, 1]} : vector<16x32xf32> to vector<15x32xf32>
    %104 = vector.extract_strided_slice %45 {offsets = [1, 0], sizes = [15, 32], strides = [1, 1]} : vector<16x32xf32> to vector<15x32xf32>
    %105 = arith.subf %103, %104 : vector<15x32xf32>
    %106 = math.absf %105 : vector<15x32xf32>
    %107 = arith.mulf %102, %38 : vector<16x31xf32>
    %108 = vector.shape_cast %107 : vector<16x31xf32> to vector<1x16x31xf32>
    %cst_43 = arith.constant dense<0.000000e+00> : vector<1xf32>
    %109 = vector.multi_reduction <add>, %108, %cst_43 [1, 2] : vector<1x16x31xf32> to vector<1xf32>
    %110 = vector.shape_cast %109 : vector<1xf32> to vector<1x1x1xf32>
    %111 = vector.extract %110[0, 0, 0] : f32 from vector<1x1x1xf32>
    %112 = arith.mulf %106, %33 : vector<15x32xf32>
    %113 = vector.shape_cast %112 : vector<15x32xf32> to vector<1x15x32xf32>
    %cst_44 = arith.constant dense<0.000000e+00> : vector<1xf32>
    %114 = vector.multi_reduction <add>, %113, %cst_44 [1, 2] : vector<1x15x32xf32> to vector<1xf32>
    %115 = vector.shape_cast %114 : vector<1xf32> to vector<1x1x1xf32>
    %116 = vector.extract %115[0, 0, 0] : f32 from vector<1x1x1xf32>
    %c2_i32 = arith.constant 2 : i32
    %117 = vector.broadcast %c2_i32 : i32 to vector<8x128xi32>
    %118 = arith.cmpi eq, %39, %117 : vector<8x128xi32>
    %119 = arith.andi %42, %118 : vector<8x128xi1>
    %cst_45 = arith.constant 0.000000e+00 : f32
    %120 = vector.broadcast %111 : f32 to vector<8x128xf32>
    %121 = vector.broadcast %cst_45 : f32 to vector<8x128xf32>
    %122 = arith.select %119, %120, %121 : vector<8x128xi1>, vector<8x128xf32>
    %123 = arith.addf %98, %122 : vector<8x128xf32>
    %c3_i32 = arith.constant 3 : i32
    %124 = vector.broadcast %c3_i32 : i32 to vector<8x128xi32>
    %125 = arith.cmpi eq, %39, %124 : vector<8x128xi32>
    %126 = arith.andi %42, %125 : vector<8x128xi1>
    %cst_46 = arith.constant 0.000000e+00 : f32
    %127 = vector.broadcast %116 : f32 to vector<8x128xf32>
    %128 = vector.broadcast %cst_46 : f32 to vector<8x128xf32>
    %129 = arith.select %126, %127, %128 : vector<8x128xi1>, vector<8x128xf32>
    %130 = arith.addf %123, %129 : vector<8x128xf32>
    %c0_47 = arith.constant 0 : index
    %c0_48 = arith.constant 0 : index
    %c0_49 = arith.constant 0 : index
    %c0_50 = arith.constant 0 : index
    %131 = vector.load %arg4[%c0_47, %c0_48, %c0_49, %c0_50] : memref<1x1x16x32xf32, #tpu.memory_space<vmem>>, vector<1x1x16x32xf32>
    %132 = vector.shape_cast %131 : vector<1x1x16x32xf32> to vector<16x32xf32>
    %133 = arith.subf %132, %3 : vector<16x32xf32>
    %134 = math.absf %133 : vector<16x32xf32>
    %135 = vector.shape_cast %134 : vector<16x32xf32> to vector<1x16x32xf32>
    %cst_51 = arith.constant dense<0.000000e+00> : vector<1xf32>
    %136 = vector.multi_reduction <add>, %135, %cst_51 [1, 2] : vector<1x16x32xf32> to vector<1xf32>
    %137 = vector.shape_cast %136 : vector<1xf32> to vector<1x1x1xf32>
    %138 = vector.extract %137[0, 0, 0] : f32 from vector<1x1x1xf32>
    %cst_52 = arith.constant dense<0.000000e+00> : vector<16x32xf32>
    %139 = tpu.matmul %132, %0, %cst_52 {dimension_numbers = #tpu.dot_dimension_numbers<[1], [0], [0], [1], [0, 0, 1, 1], [], []>} : vector<16x32xf32>, vector<32x32xf32>, vector<16x32xf32> -> vector<16x32xf32>
    %cst_53 = arith.constant dense<0.000000e+00> : vector<16x32xf32>
    %140 = tpu.matmul %1, %139, %cst_53 {dimension_numbers = #tpu.dot_dimension_numbers<[1], [0], [0], [1], [0, 0, 1, 1], [], []>} : vector<16x16xf32>, vector<16x32xf32>, vector<16x32xf32> -> vector<16x32xf32>
    %141 = arith.mulf %140, %140 : vector<16x32xf32>
    %142 = arith.mulf %140, %5 : vector<16x32xf32>
    %143 = arith.mulf %132, %132 : vector<16x32xf32>
    %cst_54 = arith.constant dense<0.000000e+00> : vector<16x32xf32>
    %144 = tpu.matmul %143, %0, %cst_54 {dimension_numbers = #tpu.dot_dimension_numbers<[1], [0], [0], [1], [0, 0, 1, 1], [], []>} : vector<16x32xf32>, vector<32x32xf32>, vector<16x32xf32> -> vector<16x32xf32>
    %cst_55 = arith.constant dense<0.000000e+00> : vector<16x32xf32>
    %145 = tpu.matmul %1, %144, %cst_55 {dimension_numbers = #tpu.dot_dimension_numbers<[1], [0], [0], [1], [0, 0, 1, 1], [], []>} : vector<16x16xf32>, vector<16x32xf32>, vector<16x32xf32> -> vector<16x32xf32>
    %146 = arith.subf %145, %141 : vector<16x32xf32>
    %147 = arith.mulf %132, %3 : vector<16x32xf32>
    %cst_56 = arith.constant dense<0.000000e+00> : vector<16x32xf32>
    %148 = tpu.matmul %147, %0, %cst_56 {dimension_numbers = #tpu.dot_dimension_numbers<[1], [0], [0], [1], [0, 0, 1, 1], [], []>} : vector<16x32xf32>, vector<32x32xf32>, vector<16x32xf32> -> vector<16x32xf32>
    %cst_57 = arith.constant dense<0.000000e+00> : vector<16x32xf32>
    %149 = tpu.matmul %1, %148, %cst_57 {dimension_numbers = #tpu.dot_dimension_numbers<[1], [0], [0], [1], [0, 0, 1, 1], [], []>} : vector<16x16xf32>, vector<16x32xf32>, vector<16x32xf32> -> vector<16x32xf32>
    %150 = arith.subf %149, %142 : vector<16x32xf32>
    %cst_58 = arith.constant 2.000000e+00 : f32
    %151 = vector.broadcast %cst_58 : f32 to vector<16x32xf32>
    %152 = arith.mulf %151, %142 : vector<16x32xf32>
    %cst_59 = arith.constant 9.99999974E-5 : f32
    %153 = vector.broadcast %cst_59 : f32 to vector<16x32xf32>
    %154 = arith.addf %152, %153 : vector<16x32xf32>
    %cst_60 = arith.constant 2.000000e+00 : f32
    %155 = vector.broadcast %cst_60 : f32 to vector<16x32xf32>
    %156 = arith.mulf %155, %150 : vector<16x32xf32>
    %cst_61 = arith.constant 8.99999984E-4 : f32
    %157 = vector.broadcast %cst_61 : f32 to vector<16x32xf32>
    %158 = arith.addf %156, %157 : vector<16x32xf32>
    %159 = arith.mulf %154, %158 : vector<16x32xf32>
    %160 = arith.addf %141, %6 : vector<16x32xf32>
    %cst_62 = arith.constant 9.99999974E-5 : f32
    %161 = vector.broadcast %cst_62 : f32 to vector<16x32xf32>
    %162 = arith.addf %160, %161 : vector<16x32xf32>
    %163 = arith.addf %146, %10 : vector<16x32xf32>
    %cst_63 = arith.constant 8.99999984E-4 : f32
    %164 = vector.broadcast %cst_63 : f32 to vector<16x32xf32>
    %165 = arith.addf %163, %164 : vector<16x32xf32>
    %166 = arith.mulf %162, %165 : vector<16x32xf32>
    %167 = arith.divf %159, %166 : vector<16x32xf32>
    %168 = vector.shape_cast %167 : vector<16x32xf32> to vector<1x16x32xf32>
    %cst_64 = arith.constant dense<0.000000e+00> : vector<1xf32>
    %169 = vector.multi_reduction <add>, %168, %cst_64 [1, 2] : vector<1x16x32xf32> to vector<1xf32>
    %170 = vector.shape_cast %169 : vector<1xf32> to vector<1x1x1xf32>
    %171 = vector.extract %170[0, 0, 0] : f32 from vector<1x1x1xf32>
    %c4_i32 = arith.constant 4 : i32
    %172 = vector.broadcast %c4_i32 : i32 to vector<8x128xi32>
    %173 = arith.cmpi eq, %39, %172 : vector<8x128xi32>
    %174 = arith.andi %42, %173 : vector<8x128xi1>
    %cst_65 = arith.constant 0.000000e+00 : f32
    %175 = vector.broadcast %138 : f32 to vector<8x128xf32>
    %176 = vector.broadcast %cst_65 : f32 to vector<8x128xf32>
    %177 = arith.select %174, %175, %176 : vector<8x128xi1>, vector<8x128xf32>
    %178 = arith.addf %130, %177 : vector<8x128xf32>
    %c5_i32 = arith.constant 5 : i32
    %179 = vector.broadcast %c5_i32 : i32 to vector<8x128xi32>
    %180 = arith.cmpi eq, %39, %179 : vector<8x128xi32>
    %181 = arith.andi %42, %180 : vector<8x128xi1>
    %cst_66 = arith.constant 0.000000e+00 : f32
    %182 = vector.broadcast %171 : f32 to vector<8x128xf32>
    %183 = vector.broadcast %cst_66 : f32 to vector<8x128xf32>
    %184 = arith.select %181, %182, %183 : vector<8x128xi1>, vector<8x128xf32>
    %185 = arith.addf %178, %184 : vector<8x128xf32>
    %186 = vector.extract_strided_slice %132 {offsets = [0, 0], sizes = [16, 31], strides = [1, 1]} : vector<16x32xf32> to vector<16x31xf32>
    %187 = vector.extract_strided_slice %132 {offsets = [0, 1], sizes = [16, 31], strides = [1, 1]} : vector<16x32xf32> to vector<16x31xf32>
    %188 = arith.subf %186, %187 : vector<16x31xf32>
    %189 = math.absf %188 : vector<16x31xf32>
    %190 = vector.extract_strided_slice %132 {offsets = [0, 0], sizes = [15, 32], strides = [1, 1]} : vector<16x32xf32> to vector<15x32xf32>
    %191 = vector.extract_strided_slice %132 {offsets = [1, 0], sizes = [15, 32], strides = [1, 1]} : vector<16x32xf32> to vector<15x32xf32>
    %192 = arith.subf %190, %191 : vector<15x32xf32>
    %193 = math.absf %192 : vector<15x32xf32>
    %194 = arith.mulf %189, %38 : vector<16x31xf32>
    %195 = vector.shape_cast %194 : vector<16x31xf32> to vector<1x16x31xf32>
    %cst_67 = arith.constant dense<0.000000e+00> : vector<1xf32>
    %196 = vector.multi_reduction <add>, %195, %cst_67 [1, 2] : vector<1x16x31xf32> to vector<1xf32>
    %197 = vector.shape_cast %196 : vector<1xf32> to vector<1x1x1xf32>
    %198 = vector.extract %197[0, 0, 0] : f32 from vector<1x1x1xf32>
    %199 = arith.mulf %193, %33 : vector<15x32xf32>
    %200 = vector.shape_cast %199 : vector<15x32xf32> to vector<1x15x32xf32>
    %cst_68 = arith.constant dense<0.000000e+00> : vector<1xf32>
    %201 = vector.multi_reduction <add>, %200, %cst_68 [1, 2] : vector<1x15x32xf32> to vector<1xf32>
    %202 = vector.shape_cast %201 : vector<1xf32> to vector<1x1x1xf32>
    %203 = vector.extract %202[0, 0, 0] : f32 from vector<1x1x1xf32>
    %c6_i32 = arith.constant 6 : i32
    %204 = vector.broadcast %c6_i32 : i32 to vector<8x128xi32>
    %205 = arith.cmpi eq, %39, %204 : vector<8x128xi32>
    %206 = arith.andi %42, %205 : vector<8x128xi1>
    %cst_69 = arith.constant 0.000000e+00 : f32
    %207 = vector.broadcast %198 : f32 to vector<8x128xf32>
    %208 = vector.broadcast %cst_69 : f32 to vector<8x128xf32>
    %209 = arith.select %206, %207, %208 : vector<8x128xi1>, vector<8x128xf32>
    %210 = arith.addf %185, %209 : vector<8x128xf32>
    %c7_i32 = arith.constant 7 : i32
    %211 = vector.broadcast %c7_i32 : i32 to vector<8x128xi32>
    %212 = arith.cmpi eq, %39, %211 : vector<8x128xi32>
    %213 = arith.andi %42, %212 : vector<8x128xi1>
    %cst_70 = arith.constant 0.000000e+00 : f32
    %214 = vector.broadcast %203 : f32 to vector<8x128xf32>
    %215 = vector.broadcast %cst_70 : f32 to vector<8x128xf32>
    %216 = arith.select %213, %214, %215 : vector<8x128xi1>, vector<8x128xf32>
    %217 = arith.addf %210, %216 : vector<8x128xf32>
    %c0_71 = arith.constant 0 : index
    %c0_72 = arith.constant 0 : index
    %c0_73 = arith.constant 0 : index
    %c0_74 = arith.constant 0 : index
    %218 = vector.load %arg5[%c0_71, %c0_72, %c0_73, %c0_74] : memref<1x1x16x32xf32, #tpu.memory_space<vmem>>, vector<1x1x16x32xf32>
    %219 = vector.shape_cast %218 : vector<1x1x16x32xf32> to vector<16x32xf32>
    %220 = arith.subf %219, %3 : vector<16x32xf32>
    %221 = math.absf %220 : vector<16x32xf32>
    %222 = vector.shape_cast %221 : vector<16x32xf32> to vector<1x16x32xf32>
    %cst_75 = arith.constant dense<0.000000e+00> : vector<1xf32>
    %223 = vector.multi_reduction <add>, %222, %cst_75 [1, 2] : vector<1x16x32xf32> to vector<1xf32>
    %224 = vector.shape_cast %223 : vector<1xf32> to vector<1x1x1xf32>
    %225 = vector.extract %224[0, 0, 0] : f32 from vector<1x1x1xf32>
    %cst_76 = arith.constant dense<0.000000e+00> : vector<16x32xf32>
    %226 = tpu.matmul %219, %0, %cst_76 {dimension_numbers = #tpu.dot_dimension_numbers<[1], [0], [0], [1], [0, 0, 1, 1], [], []>} : vector<16x32xf32>, vector<32x32xf32>, vector<16x32xf32> -> vector<16x32xf32>
    %cst_77 = arith.constant dense<0.000000e+00> : vector<16x32xf32>
    %227 = tpu.matmul %1, %226, %cst_77 {dimension_numbers = #tpu.dot_dimension_numbers<[1], [0], [0], [1], [0, 0, 1, 1], [], []>} : vector<16x16xf32>, vector<16x32xf32>, vector<16x32xf32> -> vector<16x32xf32>
    %228 = arith.mulf %227, %227 : vector<16x32xf32>
    %229 = arith.mulf %227, %5 : vector<16x32xf32>
    %230 = arith.mulf %219, %219 : vector<16x32xf32>
    %cst_78 = arith.constant dense<0.000000e+00> : vector<16x32xf32>
    %231 = tpu.matmul %230, %0, %cst_78 {dimension_numbers = #tpu.dot_dimension_numbers<[1], [0], [0], [1], [0, 0, 1, 1], [], []>} : vector<16x32xf32>, vector<32x32xf32>, vector<16x32xf32> -> vector<16x32xf32>
    %cst_79 = arith.constant dense<0.000000e+00> : vector<16x32xf32>
    %232 = tpu.matmul %1, %231, %cst_79 {dimension_numbers = #tpu.dot_dimension_numbers<[1], [0], [0], [1], [0, 0, 1, 1], [], []>} : vector<16x16xf32>, vector<16x32xf32>, vector<16x32xf32> -> vector<16x32xf32>
    %233 = arith.subf %232, %228 : vector<16x32xf32>
    %234 = arith.mulf %219, %3 : vector<16x32xf32>
    %cst_80 = arith.constant dense<0.000000e+00> : vector<16x32xf32>
    %235 = tpu.matmul %234, %0, %cst_80 {dimension_numbers = #tpu.dot_dimension_numbers<[1], [0], [0], [1], [0, 0, 1, 1], [], []>} : vector<16x32xf32>, vector<32x32xf32>, vector<16x32xf32> -> vector<16x32xf32>
    %cst_81 = arith.constant dense<0.000000e+00> : vector<16x32xf32>
    %236 = tpu.matmul %1, %235, %cst_81 {dimension_numbers = #tpu.dot_dimension_numbers<[1], [0], [0], [1], [0, 0, 1, 1], [], []>} : vector<16x16xf32>, vector<16x32xf32>, vector<16x32xf32> -> vector<16x32xf32>
    %237 = arith.subf %236, %229 : vector<16x32xf32>
    %cst_82 = arith.constant 2.000000e+00 : f32
    %238 = vector.broadcast %cst_82 : f32 to vector<16x32xf32>
    %239 = arith.mulf %238, %229 : vector<16x32xf32>
    %cst_83 = arith.constant 9.99999974E-5 : f32
    %240 = vector.broadcast %cst_83 : f32 to vector<16x32xf32>
    %241 = arith.addf %239, %240 : vector<16x32xf32>
    %cst_84 = arith.constant 2.000000e+00 : f32
    %242 = vector.broadcast %cst_84 : f32 to vector<16x32xf32>
    %243 = arith.mulf %242, %237 : vector<16x32xf32>
    %cst_85 = arith.constant 8.99999984E-4 : f32
    %244 = vector.broadcast %cst_85 : f32 to vector<16x32xf32>
    %245 = arith.addf %243, %244 : vector<16x32xf32>
    %246 = arith.mulf %241, %245 : vector<16x32xf32>
    %247 = arith.addf %228, %6 : vector<16x32xf32>
    %cst_86 = arith.constant 9.99999974E-5 : f32
    %248 = vector.broadcast %cst_86 : f32 to vector<16x32xf32>
    %249 = arith.addf %247, %248 : vector<16x32xf32>
    %250 = arith.addf %233, %10 : vector<16x32xf32>
    %cst_87 = arith.constant 8.99999984E-4 : f32
    %251 = vector.broadcast %cst_87 : f32 to vector<16x32xf32>
    %252 = arith.addf %250, %251 : vector<16x32xf32>
    %253 = arith.mulf %249, %252 : vector<16x32xf32>
    %254 = arith.divf %246, %253 : vector<16x32xf32>
    %255 = vector.shape_cast %254 : vector<16x32xf32> to vector<1x16x32xf32>
    %cst_88 = arith.constant dense<0.000000e+00> : vector<1xf32>
    %256 = vector.multi_reduction <add>, %255, %cst_88 [1, 2] : vector<1x16x32xf32> to vector<1xf32>
    %257 = vector.shape_cast %256 : vector<1xf32> to vector<1x1x1xf32>
    %258 = vector.extract %257[0, 0, 0] : f32 from vector<1x1x1xf32>
    %c8_i32 = arith.constant 8 : i32
    %259 = vector.broadcast %c8_i32 : i32 to vector<8x128xi32>
    %260 = arith.cmpi eq, %39, %259 : vector<8x128xi32>
    %261 = arith.andi %42, %260 : vector<8x128xi1>
    %cst_89 = arith.constant 0.000000e+00 : f32
    %262 = vector.broadcast %225 : f32 to vector<8x128xf32>
    %263 = vector.broadcast %cst_89 : f32 to vector<8x128xf32>
    %264 = arith.select %261, %262, %263 : vector<8x128xi1>, vector<8x128xf32>
    %265 = arith.addf %217, %264 : vector<8x128xf32>
    %c9_i32 = arith.constant 9 : i32
    %266 = vector.broadcast %c9_i32 : i32 to vector<8x128xi32>
    %267 = arith.cmpi eq, %39, %266 : vector<8x128xi32>
    %268 = arith.andi %42, %267 : vector<8x128xi1>
    %cst_90 = arith.constant 0.000000e+00 : f32
    %269 = vector.broadcast %258 : f32 to vector<8x128xf32>
    %270 = vector.broadcast %cst_90 : f32 to vector<8x128xf32>
    %271 = arith.select %268, %269, %270 : vector<8x128xi1>, vector<8x128xf32>
    %272 = arith.addf %265, %271 : vector<8x128xf32>
    %273 = vector.extract_strided_slice %219 {offsets = [0, 0], sizes = [16, 31], strides = [1, 1]} : vector<16x32xf32> to vector<16x31xf32>
    %274 = vector.extract_strided_slice %219 {offsets = [0, 1], sizes = [16, 31], strides = [1, 1]} : vector<16x32xf32> to vector<16x31xf32>
    %275 = arith.subf %273, %274 : vector<16x31xf32>
    %276 = math.absf %275 : vector<16x31xf32>
    %277 = vector.extract_strided_slice %219 {offsets = [0, 0], sizes = [15, 32], strides = [1, 1]} : vector<16x32xf32> to vector<15x32xf32>
    %278 = vector.extract_strided_slice %219 {offsets = [1, 0], sizes = [15, 32], strides = [1, 1]} : vector<16x32xf32> to vector<15x32xf32>
    %279 = arith.subf %277, %278 : vector<15x32xf32>
    %280 = math.absf %279 : vector<15x32xf32>
    %281 = arith.mulf %276, %38 : vector<16x31xf32>
    %282 = vector.shape_cast %281 : vector<16x31xf32> to vector<1x16x31xf32>
    %cst_91 = arith.constant dense<0.000000e+00> : vector<1xf32>
    %283 = vector.multi_reduction <add>, %282, %cst_91 [1, 2] : vector<1x16x31xf32> to vector<1xf32>
    %284 = vector.shape_cast %283 : vector<1xf32> to vector<1x1x1xf32>
    %285 = vector.extract %284[0, 0, 0] : f32 from vector<1x1x1xf32>
    %286 = arith.mulf %280, %33 : vector<15x32xf32>
    %287 = vector.shape_cast %286 : vector<15x32xf32> to vector<1x15x32xf32>
    %cst_92 = arith.constant dense<0.000000e+00> : vector<1xf32>
    %288 = vector.multi_reduction <add>, %287, %cst_92 [1, 2] : vector<1x15x32xf32> to vector<1xf32>
    %289 = vector.shape_cast %288 : vector<1xf32> to vector<1x1x1xf32>
    %290 = vector.extract %289[0, 0, 0] : f32 from vector<1x1x1xf32>
    %c10_i32 = arith.constant 10 : i32
    %291 = vector.broadcast %c10_i32 : i32 to vector<8x128xi32>
    %292 = arith.cmpi eq, %39, %291 : vector<8x128xi32>
    %293 = arith.andi %42, %292 : vector<8x128xi1>
    %cst_93 = arith.constant 0.000000e+00 : f32
    %294 = vector.broadcast %285 : f32 to vector<8x128xf32>
    %295 = vector.broadcast %cst_93 : f32 to vector<8x128xf32>
    %296 = arith.select %293, %294, %295 : vector<8x128xi1>, vector<8x128xf32>
    %297 = arith.addf %272, %296 : vector<8x128xf32>
    %c11_i32 = arith.constant 11 : i32
    %298 = vector.broadcast %c11_i32 : i32 to vector<8x128xi32>
    %299 = arith.cmpi eq, %39, %298 : vector<8x128xi32>
    %300 = arith.andi %42, %299 : vector<8x128xi1>
    %cst_94 = arith.constant 0.000000e+00 : f32
    %301 = vector.broadcast %290 : f32 to vector<8x128xf32>
    %302 = vector.broadcast %cst_94 : f32 to vector<8x128xf32>
    %303 = arith.select %300, %301, %302 : vector<8x128xi1>, vector<8x128xf32>
    %304 = arith.addf %297, %303 : vector<8x128xf32>
    %c0_95 = arith.constant 0 : index
    %c0_96 = arith.constant 0 : index
    %c0_97 = arith.constant 0 : index
    %305 = vector.load %arg8[%c0_95, %c0_96, %c0_97] : memref<1x8x128xf32, #tpu.memory_space<vmem>>, vector<1x8x128xf32>
    %306 = vector.shape_cast %305 : vector<1x8x128xf32> to vector<8x128xf32>
    %307 = vector.shape_cast %304 : vector<8x128xf32> to vector<1x8x128xf32>
    tpu.vector_store %arg8[%c0_95, %c0_96, %c0_97], %307 {strides = array<i32>} : memref<1x8x128xf32, #tpu.memory_space<vmem>>, vector<1x8x128xf32>,
    return
  }
  func.func @transform_0(%arg0: i32) -> (i32, i32) {
    %c0_i32 = arith.constant 0 : i32
    %c0_i32_0 = arith.constant 0 : i32
    %c0_i32_1 = arith.constant 0 : i32
    return %c0_i32, %c0_i32_0 : i32, i32
  }
  func.func @transform_1(%arg0: i32) -> (i32, i32) {
    %c0_i32 = arith.constant 0 : i32
    %c0_i32_0 = arith.constant 0 : i32
    %c0_i32_1 = arith.constant 0 : i32
    return %c0_i32, %c0_i32_0 : i32, i32
  }
  func.func @transform_2(%arg0: i32) -> (i32, i32, i32, i32) {
    %c0_i32 = arith.constant 0 : i32
    %c0_i32_0 = arith.constant 0 : i32
    %c0_i32_1 = arith.constant 0 : i32
    %c0_i32_2 = arith.constant 0 : i32
    return %arg0, %c0_i32, %c0_i32_0, %c0_i32_1 : i32, i32, i32, i32
  }
  func.func @transform_3(%arg0: i32) -> (i32, i32, i32, i32) {
    %c0_i32 = arith.constant 0 : i32
    %c0_i32_0 = arith.constant 0 : i32
    %c0_i32_1 = arith.constant 0 : i32
    %c0_i32_2 = arith.constant 0 : i32
    return %arg0, %c0_i32, %c0_i32_0, %c0_i32_1 : i32, i32, i32, i32
  }
  func.func @transform_4(%arg0: i32) -> (i32, i32, i32, i32) {
    %c0_i32 = arith.constant 0 : i32
    %c0_i32_0 = arith.constant 0 : i32
    %c0_i32_1 = arith.constant 0 : i32
    %c0_i32_2 = arith.constant 0 : i32
    return %arg0, %c0_i32, %c0_i32_0, %c0_i32_1 : i32, i32, i32, i32
  }
  func.func @transform_5(%arg0: i32) -> (i32, i32, i32, i32) {
    %c0_i32 = arith.constant 0 : i32
    %c0_i32_0 = arith.constant 0 : i32
    %c0_i32_1 = arith.constant 0 : i32
    %c0_i32_2 = arith.constant 0 : i32
    return %arg0, %c0_i32, %c0_i32_0, %c0_i32_1 : i32, i32, i32, i32
  }
  func.func @transform_6(%arg0: i32) -> (i32, i32, i32, i32) {
    %c0_i32 = arith.constant 0 : i32
    %c0_i32_0 = arith.constant 0 : i32
    %c0_i32_1 = arith.constant 0 : i32
    %c0_i32_2 = arith.constant 0 : i32
    return %arg0, %c0_i32, %c0_i32_0, %c0_i32_1 : i32, i32, i32, i32
  }
  func.func @transform_7(%arg0: i32) -> (i32, i32, i32) {
    %c0_i32 = arith.constant 0 : i32
    %c0_i32_0 = arith.constant 0 : i32
    %c0_i32_1 = arith.constant 0 : i32
    return %arg0, %c0_i32, %c0_i32_0 : i32, i32, i32
  }
}

</mosaic_0001>

<llo_original>
// kernel: tpu_custom_call.1
$region0: #{tpu_custom_call.1}
  #allocation0 [shape = 'u32[]', space=smem, size = 0x4, offset = 0x4, fixed_abs, tag = 'smem constant byte address 0x4 - core index']
  #allocation1 [shape = 'u32[72,128]{1,0:T(1,128)}', space=vmem, size = 0x9000, scoped, tag = 'internal scratch']
  %s0 = inlined_call_operand.hbm [shape: f32[32,32], index: 0, kind: input, shape index: {}]
  %s1 = inlined_call_operand.hbm [shape: f32[16,16], index: 1, kind: input, shape index: {}]
  %s2 = inlined_call_operand.hbm [shape: f32[1,1,16,32], index: 2, kind: input, shape index: {}]
  %s3 = inlined_call_operand.hbm [shape: f32[1,1,16,32], index: 3, kind: input, shape index: {}]
  %s4 = inlined_call_operand.hbm [shape: f32[1,1,16,32], index: 4, kind: input, shape index: {}]
  %s5 = inlined_call_operand.hbm [shape: f32[1,1,16,32], index: 5, kind: input, shape index: {}]
  %s6 = inlined_call_operand.hbm [shape: f32[1,3,16,32], index: 6, kind: input, shape index: {}]
  %s7 = inlined_call_operand.hbm [shape: f32[1,8,128], index: 7, kind: output, shape index: {}]
  %s8 = sld [smem:[#allocation0]]
  $region66: #{tpu_custom_call.1} parent=0
    _
  %s10 = ssub.s32 1, %s8
  %s11 = scalar_select 0, %s10, %s8
  $region1: #{tpu_custom_call.1} parent=0
    #allocation2 [shape = 'u8[16384]{0}', space=vmem, size = 0x4000, scoped, tag = 'input window, operand 0, single buffered']
    #allocation3 [shape = 's32[1]{0}', space=sflag, size = 0x4, scoped, tag = 'scoped memory for tpu_custom_call.1']
    #allocation4 [shape = 's32[1]{0}', space=sflag, size = 0x4, scoped, tag = 'scoped memory for tpu_custom_call.1']
    #allocation5 [shape = 'u8[8192]{0}', space=vmem, size = 0x2000, scoped, tag = 'input window, operand 1, single buffered']
    #allocation6 [shape = 's32[1]{0}', space=sflag, size = 0x4, scoped, tag = 'scoped memory for tpu_custom_call.1']
    #allocation7 [shape = 'u8[8192]{0}', space=vmem, size = 0x2000, scoped, tag = 'input window, operand 2, single buffered']
    #allocation8 [shape = 'u8[8192]{0}', space=vmem, size = 0x2000, scoped, tag = 'input window, operand 3, single buffered']
    #allocation9 [shape = 's32[1]{0}', space=sflag, size = 0x4, scoped, tag = 'scoped memory for tpu_custom_call.1']
    #allocation10 [shape = 'u8[8192]{0}', space=vmem, size = 0x2000, scoped, tag = 'input window, operand 4, single buffered']
    #allocation11 [shape = 'u8[8192]{0}', space=vmem, size = 0x2000, scoped, tag = 'input window, operand 5, single buffered']
    #allocation12 [shape = 's32[1]{0}', space=sflag, size = 0x4, scoped, tag = 'scoped memory for tpu_custom_call.1']
    #allocation13 [shape = 'u8[24576]{0}', space=vmem, size = 0x6000, scoped, tag = 'input window, operand 6, single buffered']
    #allocation14 [shape = 'u8[4096]{0}', space=vmem, size = 0x1000, scoped, tag = 'output window, operand 0, single buffered']
    %12 = vsyncpa [#allocation3], 0
    %13 = vsyncpa [#allocation6], 0
    %14 = vsyncpa [#allocation9], 0
    %15 = vsyncpa [#allocation12], 0
    %16 = vsyncpa [#allocation4], 0
    // Predicated region
    $region2: #{tpu_custom_call.1} parent=1 // pred_check
      _
    $region3: #{tpu_custom_call.1} parent=1 // pred_check_branch
      %18 = sbr.rel (0) target = $region5
    $region4: #{tpu_custom_call.1} parent=1 // pred_region
      %20 = vsyncadd [#allocation3], 0
      %s21 = sshll.u32 %s0, 4
      %s22 = int_to_ptr.hbm [resolvable:$true] %s21
      %s23 = sshll.u32 [#allocation2], 4
      %s24 = int_to_ptr.vmem [resolvable:$true] %s23
      %29 = dma.hbm_to_vmem [thread:$0]  %s22, 512, %s24, [#allocation3], 128, 128, 8
    $region5: #{tpu_custom_call.1} parent=1 // pred_fallthru
      _
    // Predicated region
    $region6: #{tpu_custom_call.1} parent=1 // pred_check
      _
    $region7: #{tpu_custom_call.1} parent=1 // pred_check_branch
      %31 = sbr.rel (0) target = $region9
    $region8: #{tpu_custom_call.1} parent=1 // pred_region
      %33 = vsyncadd [#allocation6], 0
      %s34 = sshll.u32 %s1, 4
      %s35 = int_to_ptr.hbm [resolvable:$true] %s34
      %s36 = sshll.u32 [#allocation5], 4
      %s37 = int_to_ptr.vmem [resolvable:$true] %s36
      %42 = dma.hbm_to_vmem [thread:$0]  %s35, 256, %s37, [#allocation6], 128, 128, 8
    $region9: #{tpu_custom_call.1} parent=1 // pred_fallthru
      _
    // Predicated region
    $region10: #{tpu_custom_call.1} parent=1 // pred_check
      _
    $region11: #{tpu_custom_call.1} parent=1 // pred_check_branch
      %44 = sbr.rel (0) target = $region13
    $region12: #{tpu_custom_call.1} parent=1 // pred_region
      %46 = vsyncadd [#allocation6], 0
      %s47 = sshll.u32 %s2, 4
      %s48 = int_to_ptr.hbm [resolvable:$true] %s47
      %s49 = sshll.u32 [#allocation7], 4
      %s50 = int_to_ptr.vmem [resolvable:$true] %s49
      %55 = dma.hbm_to_vmem [thread:$0]  %s48, 256, %s50, [#allocation6], 128, 128, 8
    $region13: #{tpu_custom_call.1} parent=1 // pred_fallthru
      _
    // Predicated region
    $region14: #{tpu_custom_call.1} parent=1 // pred_check
      _
    $region15: #{tpu_custom_call.1} parent=1 // pred_check_branch
      %57 = sbr.rel (0) target = $region17
    $region16: #{tpu_custom_call.1} parent=1 // pred_region
      %59 = vsyncadd [#allocation9], 0
      %s60 = sshll.u32 %s3, 4
      %s61 = int_to_ptr.hbm [resolvable:$true] %s60
      %s62 = sshll.u32 [#allocation8], 4
      %s63 = int_to_ptr.vmem [resolvable:$true] %s62
      %68 = dma.hbm_to_vmem [thread:$0]  %s61, 256, %s63, [#allocation9], 128, 128, 8
    $region17: #{tpu_custom_call.1} parent=1 // pred_fallthru
      _
    // Predicated region
    $region18: #{tpu_custom_call.1} parent=1 // pred_check
      _
    $region19: #{tpu_custom_call.1} parent=1 // pred_check_branch
      %70 = sbr.rel (0) target = $region21
    $region20: #{tpu_custom_call.1} parent=1 // pred_region
      %72 = vsyncadd [#allocation9], 0
      %s73 = sshll.u32 %s4, 4
      %s74 = int_to_ptr.hbm [resolvable:$true] %s73
      %s75 = sshll.u32 [#allocation10], 4
      %s76 = int_to_ptr.vmem [resolvable:$true] %s75
      %81 = dma.hbm_to_vmem [thread:$0]  %s74, 256, %s76, [#allocation9], 128, 128, 8
    $region21: #{tpu_custom_call.1} parent=1 // pred_fallthru
      _
    // Predicated region
    $region22: #{tpu_custom_call.1} parent=1 // pred_check
      _
    $region23: #{tpu_custom_call.1} parent=1 // pred_check_branch
      %83 = sbr.rel (0) target = $region25
    $region24: #{tpu_custom_call.1} parent=1 // pred_region
      %85 = vsyncadd [#allocation12], 0
      %s86 = sshll.u32 %s5, 4
      %s87 = int_to_ptr.hbm [resolvable:$true] %s86
      %s88 = sshll.u32 [#allocation11], 4
      %s89 = int_to_ptr.vmem [resolvable:$true] %s88
      %94 = dma.hbm_to_vmem [thread:$0]  %s87, 256, %s89, [#allocation12], 128, 128, 8
    $region25: #{tpu_custom_call.1} parent=1 // pred_fallthru
      _
    // Predicated region
    $region26: #{tpu_custom_call.1} parent=1 // pred_check
      _
    $region27: #{tpu_custom_call.1} parent=1 // pred_check_branch
      %96 = sbr.rel (0) target = $region29
    $region28: #{tpu_custom_call.1} parent=1 // pred_region
      %98 = vsyncadd [#allocation12], 0
      %s99 = sshll.u32 %s6, 4
      %s100 = int_to_ptr.hbm [resolvable:$true] %s99
      %s101 = sshll.u32 [#allocation13], 4
      %s102 = int_to_ptr.vmem [resolvable:$true] %s101
      %107 = dma.hbm_to_vmem [thread:$0]  %s100, 768, %s102, [#allocation12], 128, 128, 8
    $region29: #{tpu_custom_call.1} parent=1 // pred_fallthru
      _
    // Predicated region
    $region30: #{tpu_custom_call.1} parent=1 // pred_check
      _
    $region31: #{tpu_custom_call.1} parent=1 // pred_check_branch
      %109 = sbr.rel (0) target = $region33
    $region32: #{tpu_custom_call.1} parent=1 // pred_region
      %111 = dma.done [#allocation3], 512
    $region33: #{tpu_custom_call.1} parent=1 // pred_fallthru
      _
    // Predicated region
    $region34: #{tpu_custom_call.1} parent=1 // pred_check
      _
    $region35: #{tpu_custom_call.1} parent=1 // pred_check_branch
      %113 = sbr.rel (0) target = $region37
    $region36: #{tpu_custom_call.1} parent=1 // pred_region
      %115 = dma.done [#allocation6], 256
    $region37: #{tpu_custom_call.1} parent=1 // pred_fallthru
      _
    // Predicated region
    $region38: #{tpu_custom_call.1} parent=1 // pred_check
      _
    $region39: #{tpu_custom_call.1} parent=1 // pred_check_branch
      %117 = sbr.rel (0) target = $region41
    $region40: #{tpu_custom_call.1} parent=1 // pred_region
      %119 = dma.done [#allocation6], 256
    $region41: #{tpu_custom_call.1} parent=1 // pred_fallthru
      _
    // Predicated region
    $region42: #{tpu_custom_call.1} parent=1 // pred_check
      _
    $region43: #{tpu_custom_call.1} parent=1 // pred_check_branch
      %121 = sbr.rel (0) target = $region45
    $region44: #{tpu_custom_call.1} parent=1 // pred_region
      %123 = dma.done [#allocation9], 256
    $region45: #{tpu_custom_call.1} parent=1 // pred_fallthru
      _
    // Predicated region
    $region46: #{tpu_custom_call.1} parent=1 // pred_check
      _
    $region47: #{tpu_custom_call.1} parent=1 // pred_check_branch
      %125 = sbr.rel (0) target = $region49
    $region48: #{tpu_custom_call.1} parent=1 // pred_region
      %127 = dma.done [#allocation9], 256
    $region49: #{tpu_custom_call.1} parent=1 // pred_fallthru
      _
    // Predicated region
    $region50: #{tpu_custom_call.1} parent=1 // pred_check
      _
    $region51: #{tpu_custom_call.1} parent=1 // pred_check_branch
      %129 = sbr.rel (0) target = $region53
    $region52: #{tpu_custom_call.1} parent=1 // pred_region
      %131 = dma.done [#allocation12], 256
    $region53: #{tpu_custom_call.1} parent=1 // pred_fallthru
      _
    // Predicated region
    $region54: #{tpu_custom_call.1} parent=1 // pred_check
      _
    $region55: #{tpu_custom_call.1} parent=1 // pred_check_branch
      %133 = sbr.rel (0) target = $region57
    $region56: #{tpu_custom_call.1} parent=1 // pred_region
      %135 = dma.done [#allocation12], 768
    $region57: #{tpu_custom_call.1} parent=1 // pred_fallthru
      _
    %v136 = vld [vmem:[#allocation2] sm:$0xff]
    %v137 = vld [vmem:[#allocation2 + $0x8] sm:$0xff]
    %v138 = vld [vmem:[#allocation2 + $0x10] sm:$0xff]
    %v139 = vld [vmem:[#allocation2 + $0x18] sm:$0xff]
    %v140 = vld [vmem:[#allocation5] sm:$0xff]
    %v141 = vld [vmem:[#allocation5 + $0x8] sm:$0xff]
    %v142 = vld [vmem:[#allocation11] sm:$0xff]
    %v143 = vld [vmem:[#allocation11 + $0x8] sm:$0xff]
    %vm144 = vcmask 261120
    %v146 = vsel %vm144, %v142, 0
    %v149 = vsel %vm144, %v143, 0
    %151 = vmatpush.msra.mxu0 0.0
    %152 = vmatpush.msra.mxu0 0.0
    %153 = vmatpush.msra.mxu0 0.0
    %154 = vmatpush.msra.mxu0 0.0
    %155 = vmatpush.msra.mxu0 0.0
    %156 = vmatpush.msra.mxu0 0.0
    %157 = vmatpush.msra.mxu0 0.0
    %158 = vmatpush.msra.mxu0 0.0
    %159 = vmatpush.msra.mxu0 0.0
    %160 = vmatpush.msra.mxu0 0.0
    %161 = vmatpush.msra.mxu0 0.0
    %162 = vmatpush.msra.mxu0 0.0
    %163 = vmatpush.msra.mxu0 %v139
    %164 = vmatpush.msra.mxu0 %v138
    %165 = vmatpush.msra.mxu0 %v137
    %166 = vmatpush.msra.mxu0 %v136
    %167 = vmatmul.f32.gmra.mxu0 %v146
    %v168 = vpop.f32.mrf.mxu0
    %v169 = vadd.f32 0.0, %v168
    %170 = vmatmul.f32.gmra.mxu0 %v149
    %v171 = vpop.f32.mrf.mxu0
    %v172 = vadd.f32 0.0, %v171
    %173 = vdwg.mxu0
    %vm174 = vcmask 130048
    %v176 = vsel %vm174, %v140, 0
    %v179 = vsel %vm174, %v141, 0
    %181 = vmatpush.msra.mxu0 0.0
    %182 = vmatpush.msra.mxu0 0.0
    %183 = vmatpush.msra.mxu0 0.0
    %184 = vmatpush.msra.mxu0 0.0
    %185 = vmatpush.msra.mxu0 0.0
    %186 = vmatpush.msra.mxu0 0.0
    %187 = vmatpush.msra.mxu0 0.0
    %188 = vmatpush.msra.mxu0 0.0
    %189 = vmatpush.msra.mxu0 0.0
    %190 = vmatpush.msra.mxu0 0.0
    %191 = vmatpush.msra.mxu0 0.0
    %192 = vmatpush.msra.mxu0 0.0
    %193 = vmatpush.msra.mxu0 0.0
    %194 = vmatpush.msra.mxu0 0.0
    %195 = vmatpush.msra.mxu0 %v172
    %196 = vmatpush.msra.mxu0 %v169
    %197 = vmatmul.f32.gmra.mxu0 %v176
    %v198 = vpop.f32.mrf.mxu0
    %v199 = vadd.f32 0.0, %v198
    %200 = vmatmul.f32.gmra.mxu0 %v179
    %v201 = vpop.f32.mrf.mxu0
    %v202 = vadd.f32 0.0, %v201
    %203 = vdwg.mxu0
    %v204 = vmul.f32 %v199, %v199
    %v205 = vmul.f32 %v202, %v202
    %v206 = vmul.f32 %v142, %v142
    %v207 = vmul.f32 %v143, %v143
    %v209 = vsel %vm144, %v206, 0
    %v212 = vsel %vm144, %v207, 0
    %214 = vmatpush.msra.mxu0 0.0
    %215 = vmatpush.msra.mxu0 0.0
    %216 = vmatpush.msra.mxu0 0.0
    %217 = vmatpush.msra.mxu0 0.0
    %218 = vmatpush.msra.mxu0 0.0
    %219 = vmatpush.msra.mxu0 0.0
    %220 = vmatpush.msra.mxu0 0.0
    %221 = vmatpush.msra.mxu0 0.0
    %222 = vmatpush.msra.mxu0 0.0
    %223 = vmatpush.msra.mxu0 0.0
    %224 = vmatpush.msra.mxu0 0.0
    %225 = vmatpush.msra.mxu0 0.0
    %226 = vmatpush.msra.mxu0 %v139
    %227 = vmatpush.msra.mxu0 %v138
    %228 = vmatpush.msra.mxu0 %v137
    %229 = vmatpush.msra.mxu0 %v136
    %230 = vmatmul.f32.gmra.mxu0 %v209
    %v231 = vpop.f32.mrf.mxu0
    %v232 = vadd.f32 0.0, %v231
    %233 = vmatmul.f32.gmra.mxu0 %v212
    %v234 = vpop.f32.mrf.mxu0
    %v235 = vadd.f32 0.0, %v234
    %236 = vdwg.mxu0
    %237 = vmatpush.msra.mxu0 0.0
    %238 = vmatpush.msra.mxu0 0.0
    %239 = vmatpush.msra.mxu0 0.0
    %240 = vmatpush.msra.mxu0 0.0
    %241 = vmatpush.msra.mxu0 0.0
    %242 = vmatpush.msra.mxu0 0.0
    %243 = vmatpush.msra.mxu0 0.0
    %244 = vmatpush.msra.mxu0 0.0
    %245 = vmatpush.msra.mxu0 0.0
    %246 = vmatpush.msra.mxu0 0.0
    %247 = vmatpush.msra.mxu0 0.0
    %248 = vmatpush.msra.mxu0 0.0
    %249 = vmatpush.msra.mxu0 0.0
    %250 = vmatpush.msra.mxu0 0.0
    %251 = vmatpush.msra.mxu0 %v235
    %252 = vmatpush.msra.mxu0 %v232
    %253 = vmatmul.f32.gmra.mxu0 %v176
    %v254 = vpop.f32.mrf.mxu0
    %v255 = vadd.f32 0.0, %v254
    %256 = vmatmul.f32.gmra.mxu0 %v179
    %v257 = vpop.f32.mrf.mxu0
    %v258 = vadd.f32 0.0, %v257
    %259 = vdwg.mxu0
    %v260 = vsub.f32 %v255, %v204
    %v261 = vsub.f32 %v258, %v205
    %v262 = vld [vmem:[#allocation13] sm:$0xff]
    %v263 = vld [vmem:[#allocation13 + $0x8] sm:$0xff]
    %v264 = vld [vmem:[#allocation13 + $0x10] sm:$0xff]
    %v265 = vld [vmem:[#allocation13 + $0x18] sm:$0xff]
    %v266 = vld [vmem:[#allocation13 + $0x20] sm:$0xff]
    %v267 = vld [vmem:[#allocation13 + $0x28] sm:$0xff]
    %v268 = vsel %vm144, %v262, 0.0
    %v269 = vsel %vm144, %v264, 0.0
    %v270 = vadd.f32 %v268, %v269
    %v271 = vsel %vm144, %v266, 0.0
    %v272 = vadd.f32 %v270, %v271
    %v273 = vsel %vm144, %v263, 0.0
    %v274 = vsel %vm144, %v265, 0.0
    %v275 = vadd.f32 %v273, %v274
    %v276 = vsel %vm144, %v267, 0.0
    %v277 = vadd.f32 %v275, %v276
    %v278 = vrcp.pop 3.0
    %v279 = vmul.f32 3.0, %v278
    %v280 = vsub.f32 1.0, %v279
    %v281 = vmul.f32 %v278, %v280
    %v282 = vadd.f32 %v278, %v281
    %vm283 = vweird.f32 %v278
    %v284 = vsel %vm283, %v278, %v282
    %v285 = vmul.f32 %v272, %v284
    %v286 = vmul.f32 %v277, %v284
    %289 = vrot.lane.b32.xlu0 %v285, 127
    %v290 = vpop.permute.xlu0 %289
    %291 = vrot.lane.b32.xlu0 %v286, 127
    %v292 = vpop.permute.xlu0 %291
    %v295 = vsub.f32 %v285, %v290
    %v296 = vsub.f32 %v286, %v292
    %v297 = vand.u32 2147483647, %v295
    %v298 = vand.u32 2147483647, %v296
    %v299 = vsub.f32 0.0, %v297
    %v300 = vsub.f32 0.0, %v298
    %v301 = vmul.f32 %v299, 10.0
    %v302 = vmul.f32 %v300, 10.0
    %v303 = vmul.f32 %v301, 1.442695
    %v304 = vpow.pop %v303
    %v305 = vmul.f32 %v302, 1.442695
    %v306 = vpow.pop %v305
    %vm307 = vcmask 1046528
    %v308 = vrot.slane %v285, 1
    %v309 = vrot.slane %v286, 1
    %v310 = vsel %vm307, %v308, %v309
    %v313 = vsub.f32 %v285, %v310
    %v314 = vsub.f32 %v286, %v309
    %v315 = vand.u32 2147483647, %v313
    %v316 = vand.u32 2147483647, %v314
    %v317 = vsub.f32 0.0, %v315
    %v318 = vsub.f32 0.0, %v316
    %v319 = vmul.f32 %v317, 10.0
    %v320 = vmul.f32 %v318, 10.0
    %v321 = vmul.f32 %v319, 1.442695
    %v322 = vpow.pop %v321
    %v323 = vmul.f32 %v320, 1.442695
    %v324 = vpow.pop %v323
    %v325 = vlaneseq
    %v326 = vand.u32 %v325, 127
    %vm327 = vcmp.eq.s32.totalorder %v326, 15
    %v328 = vsel %vm327, 0.0, %v304
    %v329 = vsel %vm327, 0.0, %v306
    %v330 = vlaneseq
    %v331 = vshrl.u32 %v330, 7
    %vm332 = vcmp.eq.s32.totalorder %v331, 0
    %v333 = vld [vmem:[#allocation7] sm:$0xff]
    %v334 = vld [vmem:[#allocation7 + $0x8] sm:$0xff]
    %v335 = vsub.f32 %v333, %v142
    %v336 = vsub.f32 %v334, %v143
    %v337 = vand.u32 2147483647, %v335
    %v338 = vand.u32 2147483647, %v336
    %v339 = vsel %vm144, %v337, 0.0
    %v340 = vsel %vm144, %v338, 0.0
    %v341 = vadd.f32 %v339, %v340
    %342 = vadd.xlane.f32.xlu0 %v341
    %v343 = vpop.xlane.xlu0 %342
    %v344 = vrot.slane %v343, 4
    %v345 = vadd.f32 %v343, %v344
    %v346 = vrot.slane %v345, 2
    %v347 = vadd.f32 %v345, %v346
    %v348 = vrot.slane %v347, 1
    %v349 = vadd.f32 %v347, %v348
    %s350 = vtos %v349
    %v352 = vsel %vm144, %v333, 0
    %v355 = vsel %vm144, %v334, 0
    %357 = vmatpush.msra.mxu0 0.0
    %358 = vmatpush.msra.mxu0 0.0
    %359 = vmatpush.msra.mxu0 0.0
    %360 = vmatpush.msra.mxu0 0.0
    %361 = vmatpush.msra.mxu0 0.0
    %362 = vmatpush.msra.mxu0 0.0
    %363 = vmatpush.msra.mxu0 0.0
    %364 = vmatpush.msra.mxu0 0.0
    %365 = vmatpush.msra.mxu0 0.0
    %366 = vmatpush.msra.mxu0 0.0
    %367 = vmatpush.msra.mxu0 0.0
    %368 = vmatpush.msra.mxu0 0.0
    %369 = vmatpush.msra.mxu0 %v139
    %370 = vmatpush.msra.mxu0 %v138
    %371 = vmatpush.msra.mxu0 %v137
    %372 = vmatpush.msra.mxu0 %v136
    %373 = vmatmul.f32.gmra.mxu0 %v352
    %v374 = vpop.f32.mrf.mxu0
    %v375 = vadd.f32 0.0, %v374
    %376 = vmatmul.f32.gmra.mxu0 %v355
    %v377 = vpop.f32.mrf.mxu0
    %v378 = vadd.f32 0.0, %v377
    %379 = vdwg.mxu0
    %380 = vmatpush.msra.mxu0 0.0
    %381 = vmatpush.msra.mxu0 0.0
    %382 = vmatpush.msra.mxu0 0.0
    %383 = vmatpush.msra.mxu0 0.0
    %384 = vmatpush.msra.mxu0 0.0
    %385 = vmatpush.msra.mxu0 0.0
    %386 = vmatpush.msra.mxu0 0.0
    %387 = vmatpush.msra.mxu0 0.0
    %388 = vmatpush.msra.mxu0 0.0
    %389 = vmatpush.msra.mxu0 0.0
    %390 = vmatpush.msra.mxu0 0.0
    %391 = vmatpush.msra.mxu0 0.0
    %392 = vmatpush.msra.mxu0 0.0
    %393 = vmatpush.msra.mxu0 0.0
    %394 = vmatpush.msra.mxu0 %v378
    %395 = vmatpush.msra.mxu0 %v375
    %396 = vmatmul.f32.gmra.mxu0 %v176
    %v397 = vpop.f32.mrf.mxu0
    %v398 = vadd.f32 0.0, %v397
    %399 = vmatmul.f32.gmra.mxu0 %v179
    %v400 = vpop.f32.mrf.mxu0
    %v401 = vadd.f32 0.0, %v400
    %402 = vdwg.mxu0
    %v403 = vmul.f32 %v398, %v398
    %v404 = vmul.f32 %v401, %v401
    %v405 = vmul.f32 %v398, %v199
    %v406 = vmul.f32 %v401, %v202
    %v407 = vmul.f32 %v333, %v333
    %v408 = vmul.f32 %v334, %v334
    %v410 = vsel %vm144, %v407, 0
    %v413 = vsel %vm144, %v408, 0
    %415 = vmatpush.msra.mxu0 0.0
    %416 = vmatpush.msra.mxu0 0.0
    %417 = vmatpush.msra.mxu0 0.0
    %418 = vmatpush.msra.mxu0 0.0
    %419 = vmatpush.msra.mxu0 0.0
    %420 = vmatpush.msra.mxu0 0.0
    %421 = vmatpush.msra.mxu0 0.0
    %422 = vmatpush.msra.mxu0 0.0
    %423 = vmatpush.msra.mxu0 0.0
    %424 = vmatpush.msra.mxu0 0.0
    %425 = vmatpush.msra.mxu0 0.0
    %426 = vmatpush.msra.mxu0 0.0
    %427 = vmatpush.msra.mxu0 %v139
    %428 = vmatpush.msra.mxu0 %v138
    %429 = vmatpush.msra.mxu0 %v137
    %430 = vmatpush.msra.mxu0 %v136
    %431 = vmatmul.f32.gmra.mxu0 %v410
    %v432 = vpop.f32.mrf.mxu0
    %v433 = vadd.f32 0.0, %v432
    %434 = vmatmul.f32.gmra.mxu0 %v413
    %v435 = vpop.f32.mrf.mxu0
    %v436 = vadd.f32 0.0, %v435
    %437 = vdwg.mxu0
    %438 = vmatpush.msra.mxu0 0.0
    %439 = vmatpush.msra.mxu0 0.0
    %440 = vmatpush.msra.mxu0 0.0
    %441 = vmatpush.msra.mxu0 0.0
    %442 = vmatpush.msra.mxu0 0.0
    %443 = vmatpush.msra.mxu0 0.0
    %444 = vmatpush.msra.mxu0 0.0
    %445 = vmatpush.msra.mxu0 0.0
    %446 = vmatpush.msra.mxu0 0.0
    %447 = vmatpush.msra.mxu0 0.0
    %448 = vmatpush.msra.mxu0 0.0
    %449 = vmatpush.msra.mxu0 0.0
    %450 = vmatpush.msra.mxu0 0.0
    %451 = vmatpush.msra.mxu0 0.0
    %452 = vmatpush.msra.mxu0 %v436
    %453 = vmatpush.msra.mxu0 %v433
    %454 = vmatmul.f32.gmra.mxu0 %v176
    %v455 = vpop.f32.mrf.mxu0
    %v456 = vadd.f32 0.0, %v455
    %457 = vmatmul.f32.gmra.mxu0 %v179
    %v458 = vpop.f32.mrf.mxu0
    %v459 = vadd.f32 0.0, %v458
    %460 = vdwg.mxu0
    %v461 = vsub.f32 %v456, %v403
    %v462 = vsub.f32 %v459, %v404
    %v463 = vmul.f32 %v333, %v142
    %v464 = vmul.f32 %v334, %v143
    %v466 = vsel %vm144, %v463, 0
    %v469 = vsel %vm144, %v464, 0
    %471 = vmatpush.msra.mxu0 0.0
    %472 = vmatpush.msra.mxu0 0.0
    %473 = vmatpush.msra.mxu0 0.0
    %474 = vmatpush.msra.mxu0 0.0
    %475 = vmatpush.msra.mxu0 0.0
    %476 = vmatpush.msra.mxu0 0.0
    %477 = vmatpush.msra.mxu0 0.0
    %478 = vmatpush.msra.mxu0 0.0
    %479 = vmatpush.msra.mxu0 0.0
    %480 = vmatpush.msra.mxu0 0.0
    %481 = vmatpush.msra.mxu0 0.0
    %482 = vmatpush.msra.mxu0 0.0
    %483 = vmatpush.msra.mxu0 %v139
    %484 = vmatpush.msra.mxu0 %v138
    %485 = vmatpush.msra.mxu0 %v137
    %486 = vmatpush.msra.mxu0 %v136
    %487 = vmatmul.f32.gmra.mxu0 %v466
    %v488 = vpop.f32.mrf.mxu0
    %v489 = vadd.f32 0.0, %v488
    %490 = vmatmul.f32.gmra.mxu0 %v469
    %v491 = vpop.f32.mrf.mxu0
    %v492 = vadd.f32 0.0, %v491
    %493 = vdwg.mxu0
    %494 = vmatpush.msra.mxu0 0.0
    %495 = vmatpush.msra.mxu0 0.0
    %496 = vmatpush.msra.mxu0 0.0
    %497 = vmatpush.msra.mxu0 0.0
    %498 = vmatpush.msra.mxu0 0.0
    %499 = vmatpush.msra.mxu0 0.0
    %500 = vmatpush.msra.mxu0 0.0
    %501 = vmatpush.msra.mxu0 0.0
    %502 = vmatpush.msra.mxu0 0.0
    %503 = vmatpush.msra.mxu0 0.0
    %504 = vmatpush.msra.mxu0 0.0
    %505 = vmatpush.msra.mxu0 0.0
    %506 = vmatpush.msra.mxu0 0.0
    %507 = vmatpush.msra.mxu0 0.0
    %508 = vmatpush.msra.mxu0 %v492
    %509 = vmatpush.msra.mxu0 %v489
    %510 = vmatmul.f32.gmra.mxu0 %v176
    %v511 = vpop.f32.mrf.mxu0
    %v512 = vadd.f32 0.0, %v511
    %513 = vmatmul.f32.gmra.mxu0 %v179
    %v514 = vpop.f32.mrf.mxu0
    %v515 = vadd.f32 0.0, %v514
    %516 = vdwg.mxu0
    %v517 = vsub.f32 %v512, %v405
    %v518 = vsub.f32 %v515, %v406
    %v519 = vmul.f32 %v405, 2.0
    %v520 = vmul.f32 %v406, 2.0
    %v521 = vadd.f32 %v519, 0.0001
    %v522 = vadd.f32 %v520, 0.0001
    %v523 = vmul.f32 %v517, 2.0
    %v524 = vmul.f32 %v518, 2.0
    %v525 = vadd.f32 %v523, 0.0009
    %v526 = vadd.f32 %v524, 0.0009
    %v527 = vmul.f32 %v521, %v525
    %v528 = vmul.f32 %v522, %v526
    %v529 = vadd.f32 %v403, %v204
    %v530 = vadd.f32 %v404, %v205
    %v531 = vadd.f32 %v529, 0.0001
    %v532 = vadd.f32 %v530, 0.0001
    %v533 = vadd.f32 %v461, %v260
    %v534 = vadd.f32 %v462, %v261
    %v535 = vadd.f32 %v533, 0.0009
    %v536 = vadd.f32 %v534, 0.0009
    %v537 = vmul.f32 %v531, %v535
    %v538 = vmul.f32 %v532, %v536
    %v539 = vrcp.pop %v537
    %v540 = vmul.f32 %v537, %v539
    %v541 = vsub.f32 1.0, %v540
    %v542 = vmul.f32 %v539, %v541
    %v543 = vadd.f32 %v539, %v542
    %vm544 = vweird.f32 %v537
    %vm545 = vweird.f32 %v539
    %vm546 = vmor %vm544, %vm545
    %v547 = vsel %vm546, %v539, %v543
    %v548 = vand.u32 2147483647, %v537
    %vm549 = vcmp.eq.f32.partialorder %v548, 8.507059e+37
    %v550 = vand.u32 %v537, 2147483648
    %v551 = vor.u32 1.1754944e-38, %v550
    %v552 = vsel %vm549, %v551, %v547
    %v553 = vmul.f32 %v527, %v552
    %v554 = vrcp.pop %v538
    %v555 = vmul.f32 %v538, %v554
    %v556 = vsub.f32 1.0, %v555
    %v557 = vmul.f32 %v554, %v556
    %v558 = vadd.f32 %v554, %v557
    %vm559 = vweird.f32 %v538
    %vm560 = vweird.f32 %v554
    %vm561 = vmor %vm559, %vm560
    %v562 = vsel %vm561, %v554, %v558
    %v563 = vand.u32 2147483647, %v538
    %vm564 = vcmp.eq.f32.partialorder %v563, 8.507059e+37
    %v565 = vand.u32 %v538, 2147483648
    %v566 = vor.u32 1.1754944e-38, %v565
    %v567 = vsel %vm564, %v566, %v562
    %v568 = vmul.f32 %v528, %v567
    %v569 = vsel %vm144, %v553, 0.0
    %v570 = vsel %vm144, %v568, 0.0
    %v571 = vadd.f32 %v569, %v570
    %572 = vadd.xlane.f32.xlu0 %v571
    %v573 = vpop.xlane.xlu0 %572
    %v574 = vrot.slane %v573, 4
    %v575 = vadd.f32 %v573, %v574
    %v576 = vrot.slane %v575, 2
    %v577 = vadd.f32 %v575, %v576
    %v578 = vrot.slane %v577, 1
    %v579 = vadd.f32 %v577, %v578
    %s580 = vtos %v579
    %vm581 = vcmp.eq.s32.totalorder %v326, 0
    %vm582 = vmand %vm332, %vm581
    %v583 = vstv %s350
    %v584 = vsel %vm582, %v583, 0.0
    %v585 = vadd.f32 %v584, 0.0
    %vm586 = vcmp.eq.s32.totalorder %v326, 1
    %vm587 = vmand %vm332, %vm586
    %v588 = vstv %s580
    %v589 = vsel %vm587, %v588, 0.0
    %v590 = vadd.f32 %v585, %v589
    %591 = vrot.lane.b32.xlu0 %v333, 127
    %v592 = vpop.permute.xlu0 %591
    %593 = vrot.lane.b32.xlu0 %v334, 127
    %v594 = vpop.permute.xlu0 %593
    %v597 = vsub.f32 %v333, %v592
    %v598 = vsub.f32 %v334, %v594
    %v599 = vand.u32 2147483647, %v597
    %v600 = vand.u32 2147483647, %v598
    %v601 = vrot.slane %v333, 1
    %v602 = vrot.slane %v334, 1
    %v603 = vsel %vm307, %v601, %v602
    %v606 = vsub.f32 %v333, %v603
    %v607 = vsub.f32 %v334, %v602
    %v608 = vand.u32 2147483647, %v606
    %v609 = vand.u32 2147483647, %v607
    %v610 = vmul.f32 %v599, %v328
    %v611 = vmul.f32 %v600, %v329
    %vm612 = vcmask 252928
    %v613 = vsel %vm612, %v610, 0.0
    %v614 = vsel %vm612, %v611, 0.0
    %v615 = vadd.f32 %v613, %v614
    %616 = vadd.xlane.f32.xlu0 %v615
    %v617 = vpop.xlane.xlu0 %616
    %v618 = vrot.slane %v617, 4
    %v619 = vadd.f32 %v617, %v618
    %v620 = vrot.slane %v619, 2
    %v621 = vadd.f32 %v619, %v620
    %v622 = vrot.slane %v621, 1
    %v623 = vadd.f32 %v621, %v622
    %s624 = vtos %v623
    %v625 = vmul.f32 %v608, %v322
    %v626 = vmul.f32 %v609, %v324
    %v627 = vsel %vm144, %v625, 0.0
    %vm628 = vcmask 260096
    %v629 = vsel %vm628, %v626, 0.0
    %v630 = vadd.f32 %v627, %v629
    %631 = vadd.xlane.f32.xlu0 %v630
    %v632 = vpop.xlane.xlu0 %631
    %v633 = vrot.slane %v632, 4
    %v634 = vadd.f32 %v632, %v633
    %v635 = vrot.slane %v634, 2
    %v636 = vadd.f32 %v634, %v635
    %v637 = vrot.slane %v636, 1
    %v638 = vadd.f32 %v636, %v637
    %s639 = vtos %v638
    %vm640 = vcmp.eq.s32.totalorder %v326, 2
    %vm641 = vmand %vm332, %vm640
    %v642 = vstv %s624
    %v643 = vsel %vm641, %v642, 0.0
    %v644 = vadd.f32 %v590, %v643
    %vm645 = vcmp.eq.s32.totalorder %v326, 3
    %vm646 = vmand %vm332, %vm645
    %v647 = vstv %s639
    %v648 = vsel %vm646, %v647, 0.0
    %v649 = vadd.f32 %v644, %v648
    %v650 = vld [vmem:[#allocation8] sm:$0xff]
    %v651 = vld [vmem:[#allocation8 + $0x8] sm:$0xff]
    %v652 = vsub.f32 %v650, %v142
    %v653 = vsub.f32 %v651, %v143
    %v654 = vand.u32 2147483647, %v652
    %v655 = vand.u32 2147483647, %v653
    %v656 = vsel %vm144, %v654, 0.0
    %v657 = vsel %vm144, %v655, 0.0
    %v658 = vadd.f32 %v656, %v657
    %659 = vadd.xlane.f32.xlu0 %v658
    %v660 = vpop.xlane.xlu0 %659
    %v661 = vrot.slane %v660, 4
    %v662 = vadd.f32 %v660, %v661
    %v663 = vrot.slane %v662, 2
    %v664 = vadd.f32 %v662, %v663
    %v665 = vrot.slane %v664, 1
    %v666 = vadd.f32 %v664, %v665
    %s667 = vtos %v666
    %v669 = vsel %vm144, %v650, 0
    %v672 = vsel %vm144, %v651, 0
    %674 = vmatpush.msra.mxu0 0.0
    %675 = vmatpush.msra.mxu0 0.0
    %676 = vmatpush.msra.mxu0 0.0
    %677 = vmatpush.msra.mxu0 0.0
    %678 = vmatpush.msra.mxu0 0.0
    %679 = vmatpush.msra.mxu0 0.0
    %680 = vmatpush.msra.mxu0 0.0
    %681 = vmatpush.msra.mxu0 0.0
    %682 = vmatpush.msra.mxu0 0.0
    %683 = vmatpush.msra.mxu0 0.0
    %684 = vmatpush.msra.mxu0 0.0
    %685 = vmatpush.msra.mxu0 0.0
    %686 = vmatpush.msra.mxu0 %v139
    %687 = vmatpush.msra.mxu0 %v138
    %688 = vmatpush.msra.mxu0 %v137
    %689 = vmatpush.msra.mxu0 %v136
    %690 = vmatmul.f32.gmra.mxu0 %v669
    %v691 = vpop.f32.mrf.mxu0
    %v692 = vadd.f32 0.0, %v691
    %693 = vmatmul.f32.gmra.mxu0 %v672
    %v694 = vpop.f32.mrf.mxu0
    %v695 = vadd.f32 0.0, %v694
    %696 = vdwg.mxu0
    %697 = vmatpush.msra.mxu0 0.0
    %698 = vmatpush.msra.mxu0 0.0
    %699 = vmatpush.msra.mxu0 0.0
    %700 = vmatpush.msra.mxu0 0.0
    %701 = vmatpush.msra.mxu0 0.0
    %702 = vmatpush.msra.mxu0 0.0
    %703 = vmatpush.msra.mxu0 0.0
    %704 = vmatpush.msra.mxu0 0.0
    %705 = vmatpush.msra.mxu0 0.0
    %706 = vmatpush.msra.mxu0 0.0
    %707 = vmatpush.msra.mxu0 0.0
    %708 = vmatpush.msra.mxu0 0.0
    %709 = vmatpush.msra.mxu0 0.0
    %710 = vmatpush.msra.mxu0 0.0
    %711 = vmatpush.msra.mxu0 %v695
    %712 = vmatpush.msra.mxu0 %v692
    %713 = vmatmul.f32.gmra.mxu0 %v176
    %v714 = vpop.f32.mrf.mxu0
    %v715 = vadd.f32 0.0, %v714
    %716 = vmatmul.f32.gmra.mxu0 %v179
    %v717 = vpop.f32.mrf.mxu0
    %v718 = vadd.f32 0.0, %v717
    %719 = vdwg.mxu0
    %v720 = vmul.f32 %v715, %v715
    %v721 = vmul.f32 %v718, %v718
    %v722 = vmul.f32 %v715, %v199
    %v723 = vmul.f32 %v718, %v202
    %v724 = vmul.f32 %v650, %v650
    %v725 = vmul.f32 %v651, %v651
    %v727 = vsel %vm144, %v724, 0
    %v730 = vsel %vm144, %v725, 0
    %732 = vmatpush.msra.mxu0 0.0
    %733 = vmatpush.msra.mxu0 0.0
    %734 = vmatpush.msra.mxu0 0.0
    %735 = vmatpush.msra.mxu0 0.0
    %736 = vmatpush.msra.mxu0 0.0
    %737 = vmatpush.msra.mxu0 0.0
    %738 = vmatpush.msra.mxu0 0.0
    %739 = vmatpush.msra.mxu0 0.0
    %740 = vmatpush.msra.mxu0 0.0
    %741 = vmatpush.msra.mxu0 0.0
    %742 = vmatpush.msra.mxu0 0.0
    %743 = vmatpush.msra.mxu0 0.0
    %744 = vmatpush.msra.mxu0 %v139
    %745 = vmatpush.msra.mxu0 %v138
    %746 = vmatpush.msra.mxu0 %v137
    %747 = vmatpush.msra.mxu0 %v136
    %748 = vmatmul.f32.gmra.mxu0 %v727
    %v749 = vpop.f32.mrf.mxu0
    %v750 = vadd.f32 0.0, %v749
    %751 = vmatmul.f32.gmra.mxu0 %v730
    %v752 = vpop.f32.mrf.mxu0
    %v753 = vadd.f32 0.0, %v752
    %754 = vdwg.mxu0
    %755 = vmatpush.msra.mxu0 0.0
    %756 = vmatpush.msra.mxu0 0.0
    %757 = vmatpush.msra.mxu0 0.0
    %758 = vmatpush.msra.mxu0 0.0
    %759 = vmatpush.msra.mxu0 0.0
    %760 = vmatpush.msra.mxu0 0.0
    %761 = vmatpush.msra.mxu0 0.0
    %762 = vmatpush.msra.mxu0 0.0
    %763 = vmatpush.msra.mxu0 0.0
    %764 = vmatpush.msra.mxu0 0.0
    %765 = vmatpush.msra.mxu0 0.0
    %766 = vmatpush.msra.mxu0 0.0
    %767 = vmatpush.msra.mxu0 0.0
    %768 = vmatpush.msra.mxu0 0.0
    %769 = vmatpush.msra.mxu0 %v753
    %770 = vmatpush.msra.mxu0 %v750
    %771 = vmatmul.f32.gmra.mxu0 %v176
    %v772 = vpop.f32.mrf.mxu0
    %v773 = vadd.f32 0.0, %v772
    %774 = vmatmul.f32.gmra.mxu0 %v179
    %v775 = vpop.f32.mrf.mxu0
    %v776 = vadd.f32 0.0, %v775
    %777 = vdwg.mxu0
    %v778 = vsub.f32 %v773, %v720
    %v779 = vsub.f32 %v776, %v721
    %v780 = vmul.f32 %v650, %v142
    %v781 = vmul.f32 %v651, %v143
    %v783 = vsel %vm144, %v780, 0
    %v786 = vsel %vm144, %v781, 0
    %788 = vmatpush.msra.mxu0 0.0
    %789 = vmatpush.msra.mxu0 0.0
    %790 = vmatpush.msra.mxu0 0.0
    %791 = vmatpush.msra.mxu0 0.0
    %792 = vmatpush.msra.mxu0 0.0
    %793 = vmatpush.msra.mxu0 0.0
    %794 = vmatpush.msra.mxu0 0.0
    %795 = vmatpush.msra.mxu0 0.0
    %796 = vmatpush.msra.mxu0 0.0
    %797 = vmatpush.msra.mxu0 0.0
    %798 = vmatpush.msra.mxu0 0.0
    %799 = vmatpush.msra.mxu0 0.0
    %800 = vmatpush.msra.mxu0 %v139
    %801 = vmatpush.msra.mxu0 %v138
    %802 = vmatpush.msra.mxu0 %v137
    %803 = vmatpush.msra.mxu0 %v136
    %804 = vmatmul.f32.gmra.mxu0 %v783
    %v805 = vpop.f32.mrf.mxu0
    %v806 = vadd.f32 0.0, %v805
    %807 = vmatmul.f32.gmra.mxu0 %v786
    %v808 = vpop.f32.mrf.mxu0
    %v809 = vadd.f32 0.0, %v808
    %810 = vdwg.mxu0
    %811 = vmatpush.msra.mxu0 0.0
    %812 = vmatpush.msra.mxu0 0.0
    %813 = vmatpush.msra.mxu0 0.0
    %814 = vmatpush.msra.mxu0 0.0
    %815 = vmatpush.msra.mxu0 0.0
    %816 = vmatpush.msra.mxu0 0.0
    %817 = vmatpush.msra.mxu0 0.0
    %818 = vmatpush.msra.mxu0 0.0
    %819 = vmatpush.msra.mxu0 0.0
    %820 = vmatpush.msra.mxu0 0.0
    %821 = vmatpush.msra.mxu0 0.0
    %822 = vmatpush.msra.mxu0 0.0
    %823 = vmatpush.msra.mxu0 0.0
    %824 = vmatpush.msra.mxu0 0.0
    %825 = vmatpush.msra.mxu0 %v809
    %826 = vmatpush.msra.mxu0 %v806
    %827 = vmatmul.f32.gmra.mxu0 %v176
    %v828 = vpop.f32.mrf.mxu0
    %v829 = vadd.f32 0.0, %v828
    %830 = vmatmul.f32.gmra.mxu0 %v179
    %v831 = vpop.f32.mrf.mxu0
    %v832 = vadd.f32 0.0, %v831
    %833 = vdwg.mxu0
    %v834 = vsub.f32 %v829, %v722
    %v835 = vsub.f32 %v832, %v723
    %v836 = vmul.f32 %v722, 2.0
    %v837 = vmul.f32 %v723, 2.0
    %v838 = vadd.f32 %v836, 0.0001
    %v839 = vadd.f32 %v837, 0.0001
    %v840 = vmul.f32 %v834, 2.0
    %v841 = vmul.f32 %v835, 2.0
    %v842 = vadd.f32 %v840, 0.0009
    %v843 = vadd.f32 %v841, 0.0009
    %v844 = vmul.f32 %v838, %v842
    %v845 = vmul.f32 %v839, %v843
    %v846 = vadd.f32 %v720, %v204
    %v847 = vadd.f32 %v721, %v205
    %v848 = vadd.f32 %v846, 0.0001
    %v849 = vadd.f32 %v847, 0.0001
    %v850 = vadd.f32 %v778, %v260
    %v851 = vadd.f32 %v779, %v261
    %v852 = vadd.f32 %v850, 0.0009
    %v853 = vadd.f32 %v851, 0.0009
    %v854 = vmul.f32 %v848, %v852
    %v855 = vmul.f32 %v849, %v853
    %v856 = vrcp.pop %v854
    %v857 = vmul.f32 %v854, %v856
    %v858 = vsub.f32 1.0, %v857
    %v859 = vmul.f32 %v856, %v858
    %v860 = vadd.f32 %v856, %v859
    %vm861 = vweird.f32 %v854
    %vm862 = vweird.f32 %v856
    %vm863 = vmor %vm861, %vm862
    %v864 = vsel %vm863, %v856, %v860
    %v865 = vand.u32 2147483647, %v854
    %vm866 = vcmp.eq.f32.partialorder %v865, 8.507059e+37
    %v867 = vand.u32 %v854, 2147483648
    %v868 = vor.u32 1.1754944e-38, %v867
    %v869 = vsel %vm866, %v868, %v864
    %v870 = vmul.f32 %v844, %v869
    %v871 = vrcp.pop %v855
    %v872 = vmul.f32 %v855, %v871
    %v873 = vsub.f32 1.0, %v872
    %v874 = vmul.f32 %v871, %v873
    %v875 = vadd.f32 %v871, %v874
    %vm876 = vweird.f32 %v855
    %vm877 = vweird.f32 %v871
    %vm878 = vmor %vm876, %vm877
    %v879 = vsel %vm878, %v871, %v875
    %v880 = vand.u32 2147483647, %v855
    %vm881 = vcmp.eq.f32.partialorder %v880, 8.507059e+37
    %v882 = vand.u32 %v855, 2147483648
    %v883 = vor.u32 1.1754944e-38, %v882
    %v884 = vsel %vm881, %v883, %v879
    %v885 = vmul.f32 %v845, %v884
    %v886 = vsel %vm144, %v870, 0.0
    %v887 = vsel %vm144, %v885, 0.0
    %v888 = vadd.f32 %v886, %v887
    %889 = vadd.xlane.f32.xlu0 %v888
    %v890 = vpop.xlane.xlu0 %889
    %v891 = vrot.slane %v890, 4
    %v892 = vadd.f32 %v890, %v891
    %v893 = vrot.slane %v892, 2
    %v894 = vadd.f32 %v892, %v893
    %v895 = vrot.slane %v894, 1
    %v896 = vadd.f32 %v894, %v895
    %s897 = vtos %v896
    %vm898 = vcmp.eq.s32.totalorder %v326, 4
    %vm899 = vmand %vm332, %vm898
    %v900 = vstv %s667
    %v901 = vsel %vm899, %v900, 0.0
    %v902 = vadd.f32 %v649, %v901
    %vm903 = vcmp.eq.s32.totalorder %v326, 5
    %vm904 = vmand %vm332, %vm903
    %v905 = vstv %s897
    %v906 = vsel %vm904, %v905, 0.0
    %v907 = vadd.f32 %v902, %v906
    %908 = vrot.lane.b32.xlu0 %v650, 127
    %v909 = vpop.permute.xlu0 %908
    %910 = vrot.lane.b32.xlu0 %v651, 127
    %v911 = vpop.permute.xlu0 %910
    %v914 = vsub.f32 %v650, %v909
    %v915 = vsub.f32 %v651, %v911
    %v916 = vand.u32 2147483647, %v914
    %v917 = vand.u32 2147483647, %v915
    %v918 = vrot.slane %v650, 1
    %v919 = vrot.slane %v651, 1
    %v920 = vsel %vm307, %v918, %v919
    %v923 = vsub.f32 %v650, %v920
    %v924 = vsub.f32 %v651, %v919
    %v925 = vand.u32 2147483647, %v923
    %v926 = vand.u32 2147483647, %v924
    %v927 = vmul.f32 %v916, %v328
    %v928 = vmul.f32 %v917, %v329
    %v929 = vsel %vm612, %v927, 0.0
    %v930 = vsel %vm612, %v928, 0.0
    %v931 = vadd.f32 %v929, %v930
    %932 = vadd.xlane.f32.xlu0 %v931
    %v933 = vpop.xlane.xlu0 %932
    %v934 = vrot.slane %v933, 4
    %v935 = vadd.f32 %v933, %v934
    %v936 = vrot.slane %v935, 2
    %v937 = vadd.f32 %v935, %v936
    %v938 = vrot.slane %v937, 1
    %v939 = vadd.f32 %v937, %v938
    %s940 = vtos %v939
    %v941 = vmul.f32 %v925, %v322
    %v942 = vmul.f32 %v926, %v324
    %v943 = vsel %vm144, %v941, 0.0
    %v944 = vsel %vm628, %v942, 0.0
    %v945 = vadd.f32 %v943, %v944
    %946 = vadd.xlane.f32.xlu0 %v945
    %v947 = vpop.xlane.xlu0 %946
    %v948 = vrot.slane %v947, 4
    %v949 = vadd.f32 %v947, %v948
    %v950 = vrot.slane %v949, 2
    %v951 = vadd.f32 %v949, %v950
    %v952 = vrot.slane %v951, 1
    %v953 = vadd.f32 %v951, %v952
    %s954 = vtos %v953
    %vm955 = vcmp.eq.s32.totalorder %v326, 6
    %vm956 = vmand %vm332, %vm955
    %v957 = vstv %s940
    %v958 = vsel %vm956, %v957, 0.0
    %v959 = vadd.f32 %v907, %v958
    %vm960 = vcmp.eq.s32.totalorder %v326, 7
    %vm961 = vmand %vm332, %vm960
    %v962 = vstv %s954
    %v963 = vsel %vm961, %v962, 0.0
    %v964 = vadd.f32 %v959, %v963
    %v965 = vld [vmem:[#allocation10] sm:$0xff]
    %v966 = vld [vmem:[#allocation10 + $0x8] sm:$0xff]
    %v967 = vsub.f32 %v965, %v142
    %v968 = vsub.f32 %v966, %v143
    %v969 = vand.u32 2147483647, %v967
    %v970 = vand.u32 2147483647, %v968
    %v971 = vsel %vm144, %v969, 0.0
    %v972 = vsel %vm144, %v970, 0.0
    %v973 = vadd.f32 %v971, %v972
    %974 = vadd.xlane.f32.xlu0 %v973
    %v975 = vpop.xlane.xlu0 %974
    %v976 = vrot.slane %v975, 4
    %v977 = vadd.f32 %v975, %v976
    %v978 = vrot.slane %v977, 2
    %v979 = vadd.f32 %v977, %v978
    %v980 = vrot.slane %v979, 1
    %v981 = vadd.f32 %v979, %v980
    %s982 = vtos %v981
    %v984 = vsel %vm144, %v965, 0
    %v987 = vsel %vm144, %v966, 0
    %989 = vmatpush.msra.mxu0 0.0
    %990 = vmatpush.msra.mxu0 0.0
    %991 = vmatpush.msra.mxu0 0.0
    %992 = vmatpush.msra.mxu0 0.0
    %993 = vmatpush.msra.mxu0 0.0
    %994 = vmatpush.msra.mxu0 0.0
    %995 = vmatpush.msra.mxu0 0.0
    %996 = vmatpush.msra.mxu0 0.0
    %997 = vmatpush.msra.mxu0 0.0
    %998 = vmatpush.msra.mxu0 0.0
    %999 = vmatpush.msra.mxu0 0.0
    %1000 = vmatpush.msra.mxu0 0.0
    %1001 = vmatpush.msra.mxu0 %v139
    %1002 = vmatpush.msra.mxu0 %v138
    %1003 = vmatpush.msra.mxu0 %v137
    %1004 = vmatpush.msra.mxu0 %v136
    %1005 = vmatmul.f32.gmra.mxu0 %v984
    %v1006 = vpop.f32.mrf.mxu0
    %v1007 = vadd.f32 0.0, %v1006
    %1008 = vmatmul.f32.gmra.mxu0 %v987
    %v1009 = vpop.f32.mrf.mxu0
    %v1010 = vadd.f32 0.0, %v1009
    %1011 = vdwg.mxu0
    %1012 = vmatpush.msra.mxu0 0.0
    %1013 = vmatpush.msra.mxu0 0.0
    %1014 = vmatpush.msra.mxu0 0.0
    %1015 = vmatpush.msra.mxu0 0.0
    %1016 = vmatpush.msra.mxu0 0.0
    %1017 = vmatpush.msra.mxu0 0.0
    %1018 = vmatpush.msra.mxu0 0.0
    %1019 = vmatpush.msra.mxu0 0.0
    %1020 = vmatpush.msra.mxu0 0.0
    %1021 = vmatpush.msra.mxu0 0.0
    %1022 = vmatpush.msra.mxu0 0.0
    %1023 = vmatpush.msra.mxu0 0.0
    %1024 = vmatpush.msra.mxu0 0.0
    %1025 = vmatpush.msra.mxu0 0.0
    %1026 = vmatpush.msra.mxu0 %v1010
    %1027 = vmatpush.msra.mxu0 %v1007
    %1028 = vmatmul.f32.gmra.mxu0 %v176
    %v1029 = vpop.f32.mrf.mxu0
    %v1030 = vadd.f32 0.0, %v1029
    %1031 = vmatmul.f32.gmra.mxu0 %v179
    %v1032 = vpop.f32.mrf.mxu0
    %v1033 = vadd.f32 0.0, %v1032
    %1034 = vdwg.mxu0
    %v1035 = vmul.f32 %v1030, %v1030
    %v1036 = vmul.f32 %v1033, %v1033
    %v1037 = vmul.f32 %v1030, %v199
    %v1038 = vmul.f32 %v1033, %v202
    %v1039 = vmul.f32 %v965, %v965
    %v1040 = vmul.f32 %v966, %v966
    %v1042 = vsel %vm144, %v1039, 0
    %v1045 = vsel %vm144, %v1040, 0
    %1047 = vmatpush.msra.mxu0 0.0
    %1048 = vmatpush.msra.mxu0 0.0
    %1049 = vmatpush.msra.mxu0 0.0
    %1050 = vmatpush.msra.mxu0 0.0
    %1051 = vmatpush.msra.mxu0 0.0
    %1052 = vmatpush.msra.mxu0 0.0
    %1053 = vmatpush.msra.mxu0 0.0
    %1054 = vmatpush.msra.mxu0 0.0
    %1055 = vmatpush.msra.mxu0 0.0
    %1056 = vmatpush.msra.mxu0 0.0
    %1057 = vmatpush.msra.mxu0 0.0
    %1058 = vmatpush.msra.mxu0 0.0
    %1059 = vmatpush.msra.mxu0 %v139
    %1060 = vmatpush.msra.mxu0 %v138
    %1061 = vmatpush.msra.mxu0 %v137
    %1062 = vmatpush.msra.mxu0 %v136
    %1063 = vmatmul.f32.gmra.mxu0 %v1042
    %v1064 = vpop.f32.mrf.mxu0
    %v1065 = vadd.f32 0.0, %v1064
    %1066 = vmatmul.f32.gmra.mxu0 %v1045
    %v1067 = vpop.f32.mrf.mxu0
    %v1068 = vadd.f32 0.0, %v1067
    %1069 = vdwg.mxu0
    %1070 = vmatpush.msra.mxu0 0.0
    %1071 = vmatpush.msra.mxu0 0.0
    %1072 = vmatpush.msra.mxu0 0.0
    %1073 = vmatpush.msra.mxu0 0.0
    %1074 = vmatpush.msra.mxu0 0.0
    %1075 = vmatpush.msra.mxu0 0.0
    %1076 = vmatpush.msra.mxu0 0.0
    %1077 = vmatpush.msra.mxu0 0.0
    %1078 = vmatpush.msra.mxu0 0.0
    %1079 = vmatpush.msra.mxu0 0.0
    %1080 = vmatpush.msra.mxu0 0.0
    %1081 = vmatpush.msra.mxu0 0.0
    %1082 = vmatpush.msra.mxu0 0.0
    %1083 = vmatpush.msra.mxu0 0.0
    %1084 = vmatpush.msra.mxu0 %v1068
    %1085 = vmatpush.msra.mxu0 %v1065
    %1086 = vmatmul.f32.gmra.mxu0 %v176
    %v1087 = vpop.f32.mrf.mxu0
    %v1088 = vadd.f32 0.0, %v1087
    %1089 = vmatmul.f32.gmra.mxu0 %v179
    %v1090 = vpop.f32.mrf.mxu0
    %v1091 = vadd.f32 0.0, %v1090
    %1092 = vdwg.mxu0
    %v1093 = vsub.f32 %v1088, %v1035
    %v1094 = vsub.f32 %v1091, %v1036
    %v1095 = vmul.f32 %v965, %v142
    %v1096 = vmul.f32 %v966, %v143
    %v1098 = vsel %vm144, %v1095, 0
    %v1101 = vsel %vm144, %v1096, 0
    %1103 = vmatpush.msra.mxu0 0.0
    %1104 = vmatpush.msra.mxu0 0.0
    %1105 = vmatpush.msra.mxu0 0.0
    %1106 = vmatpush.msra.mxu0 0.0
    %1107 = vmatpush.msra.mxu0 0.0
    %1108 = vmatpush.msra.mxu0 0.0
    %1109 = vmatpush.msra.mxu0 0.0
    %1110 = vmatpush.msra.mxu0 0.0
    %1111 = vmatpush.msra.mxu0 0.0
    %1112 = vmatpush.msra.mxu0 0.0
    %1113 = vmatpush.msra.mxu0 0.0
    %1114 = vmatpush.msra.mxu0 0.0
    %1115 = vmatpush.msra.mxu0 %v139
    %1116 = vmatpush.msra.mxu0 %v138
    %1117 = vmatpush.msra.mxu0 %v137
    %1118 = vmatpush.msra.mxu0 %v136
    %1119 = vmatmul.f32.gmra.mxu0 %v1098
    %v1120 = vpop.f32.mrf.mxu0
    %v1121 = vadd.f32 0.0, %v1120
    %1122 = vmatmul.f32.gmra.mxu0 %v1101
    %v1123 = vpop.f32.mrf.mxu0
    %v1124 = vadd.f32 0.0, %v1123
    %1125 = vdwg.mxu0
    %1126 = vmatpush.msra.mxu0 0.0
    %1127 = vmatpush.msra.mxu0 0.0
    %1128 = vmatpush.msra.mxu0 0.0
    %1129 = vmatpush.msra.mxu0 0.0
    %1130 = vmatpush.msra.mxu0 0.0
    %1131 = vmatpush.msra.mxu0 0.0
    %1132 = vmatpush.msra.mxu0 0.0
    %1133 = vmatpush.msra.mxu0 0.0
    %1134 = vmatpush.msra.mxu0 0.0
    %1135 = vmatpush.msra.mxu0 0.0
    %1136 = vmatpush.msra.mxu0 0.0
    %1137 = vmatpush.msra.mxu0 0.0
    %1138 = vmatpush.msra.mxu0 0.0
    %1139 = vmatpush.msra.mxu0 0.0
    %1140 = vmatpush.msra.mxu0 %v1124
    %1141 = vmatpush.msra.mxu0 %v1121
    %1142 = vmatmul.f32.gmra.mxu0 %v176
    %v1143 = vpop.f32.mrf.mxu0
    %v1144 = vadd.f32 0.0, %v1143
    %1145 = vmatmul.f32.gmra.mxu0 %v179
    %v1146 = vpop.f32.mrf.mxu0
    %v1147 = vadd.f32 0.0, %v1146
    %1148 = vdwg.mxu0
    %v1149 = vsub.f32 %v1144, %v1037
    %v1150 = vsub.f32 %v1147, %v1038
    %v1151 = vmul.f32 %v1037, 2.0
    %v1152 = vmul.f32 %v1038, 2.0
    %v1153 = vadd.f32 %v1151, 0.0001
    %v1154 = vadd.f32 %v1152, 0.0001
    %v1155 = vmul.f32 %v1149, 2.0
    %v1156 = vmul.f32 %v1150, 2.0
    %v1157 = vadd.f32 %v1155, 0.0009
    %v1158 = vadd.f32 %v1156, 0.0009
    %v1159 = vmul.f32 %v1153, %v1157
    %v1160 = vmul.f32 %v1154, %v1158
    %v1161 = vadd.f32 %v1035, %v204
    %v1162 = vadd.f32 %v1036, %v205
    %v1163 = vadd.f32 %v1161, 0.0001
    %v1164 = vadd.f32 %v1162, 0.0001
    %v1165 = vadd.f32 %v1093, %v260
    %v1166 = vadd.f32 %v1094, %v261
    %v1167 = vadd.f32 %v1165, 0.0009
    %v1168 = vadd.f32 %v1166, 0.0009
    %v1169 = vmul.f32 %v1163, %v1167
    %v1170 = vmul.f32 %v1164, %v1168
    %v1171 = vrcp.pop %v1169
    %v1172 = vmul.f32 %v1169, %v1171
    %v1173 = vsub.f32 1.0, %v1172
    %v1174 = vmul.f32 %v1171, %v1173
    %v1175 = vadd.f32 %v1171, %v1174
    %vm1176 = vweird.f32 %v1169
    %vm1177 = vweird.f32 %v1171
    %vm1178 = vmor %vm1176, %vm1177
    %v1179 = vsel %vm1178, %v1171, %v1175
    %v1180 = vand.u32 2147483647, %v1169
    %vm1181 = vcmp.eq.f32.partialorder %v1180, 8.507059e+37
    %v1182 = vand.u32 %v1169, 2147483648
    %v1183 = vor.u32 1.1754944e-38, %v1182
    %v1184 = vsel %vm1181, %v1183, %v1179
    %v1185 = vmul.f32 %v1159, %v1184
    %v1186 = vrcp.pop %v1170
    %v1187 = vmul.f32 %v1170, %v1186
    %v1188 = vsub.f32 1.0, %v1187
    %v1189 = vmul.f32 %v1186, %v1188
    %v1190 = vadd.f32 %v1186, %v1189
    %vm1191 = vweird.f32 %v1170
    %vm1192 = vweird.f32 %v1186
    %vm1193 = vmor %vm1191, %vm1192
    %v1194 = vsel %vm1193, %v1186, %v1190
    %v1195 = vand.u32 2147483647, %v1170
    %vm1196 = vcmp.eq.f32.partialorder %v1195, 8.507059e+37
    %v1197 = vand.u32 %v1170, 2147483648
    %v1198 = vor.u32 1.1754944e-38, %v1197
    %v1199 = vsel %vm1196, %v1198, %v1194
    %v1200 = vmul.f32 %v1160, %v1199
    %v1201 = vsel %vm144, %v1185, 0.0
    %v1202 = vsel %vm144, %v1200, 0.0
    %v1203 = vadd.f32 %v1201, %v1202
    %1204 = vadd.xlane.f32.xlu0 %v1203
    %v1205 = vpop.xlane.xlu0 %1204
    %v1206 = vrot.slane %v1205, 4
    %v1207 = vadd.f32 %v1205, %v1206
    %v1208 = vrot.slane %v1207, 2
    %v1209 = vadd.f32 %v1207, %v1208
    %v1210 = vrot.slane %v1209, 1
    %v1211 = vadd.f32 %v1209, %v1210
    %s1212 = vtos %v1211
    %vm1213 = vcmp.eq.s32.totalorder %v326, 8
    %vm1214 = vmand %vm332, %vm1213
    %v1215 = vstv %s982
    %v1216 = vsel %vm1214, %v1215, 0.0
    %v1217 = vadd.f32 %v964, %v1216
    %vm1218 = vcmp.eq.s32.totalorder %v326, 9
    %vm1219 = vmand %vm332, %vm1218
    %v1220 = vstv %s1212
    %v1221 = vsel %vm1219, %v1220, 0.0
    %v1222 = vadd.f32 %v1217, %v1221
    %1223 = vrot.lane.b32.xlu0 %v965, 127
    %v1224 = vpop.permute.xlu0 %1223
    %1225 = vrot.lane.b32.xlu0 %v966, 127
    %v1226 = vpop.permute.xlu0 %1225
    %v1229 = vsub.f32 %v965, %v1224
    %v1230 = vsub.f32 %v966, %v1226
    %v1231 = vand.u32 2147483647, %v1229
    %v1232 = vand.u32 2147483647, %v1230
    %v1233 = vrot.slane %v965, 1
    %v1234 = vrot.slane %v966, 1
    %v1235 = vsel %vm307, %v1233, %v1234
    %v1238 = vsub.f32 %v965, %v1235
    %v1239 = vsub.f32 %v966, %v1234
    %v1240 = vand.u32 2147483647, %v1238
    %v1241 = vand.u32 2147483647, %v1239
    %v1242 = vmul.f32 %v1231, %v328
    %v1243 = vmul.f32 %v1232, %v329
    %v1244 = vsel %vm612, %v1242, 0.0
    %v1245 = vsel %vm612, %v1243, 0.0
    %v1246 = vadd.f32 %v1244, %v1245
    %1247 = vadd.xlane.f32.xlu0 %v1246
    %v1248 = vpop.xlane.xlu0 %1247
    %v1249 = vrot.slane %v1248, 4
    %v1250 = vadd.f32 %v1248, %v1249
    %v1251 = vrot.slane %v1250, 2
    %v1252 = vadd.f32 %v1250, %v1251
    %v1253 = vrot.slane %v1252, 1
    %v1254 = vadd.f32 %v1252, %v1253
    %s1255 = vtos %v1254
    %v1256 = vmul.f32 %v1240, %v322
    %v1257 = vmul.f32 %v1241, %v324
    %v1258 = vsel %vm144, %v1256, 0.0
    %v1259 = vsel %vm628, %v1257, 0.0
    %v1260 = vadd.f32 %v1258, %v1259
    %1261 = vadd.xlane.f32.xlu0 %v1260
    %v1262 = vpop.xlane.xlu0 %1261
    %v1263 = vrot.slane %v1262, 4
    %v1264 = vadd.f32 %v1262, %v1263
    %v1265 = vrot.slane %v1264, 2
    %v1266 = vadd.f32 %v1264, %v1265
    %v1267 = vrot.slane %v1266, 1
    %v1268 = vadd.f32 %v1266, %v1267
    %s1269 = vtos %v1268
    %vm1270 = vcmp.eq.s32.totalorder %v326, 10
    %vm1271 = vmand %vm332, %vm1270
    %v1272 = vstv %s1255
    %v1273 = vsel %vm1271, %v1272, 0.0
    %v1274 = vadd.f32 %v1222, %v1273
    %vm1275 = vcmp.eq.s32.totalorder %v326, 11
    %vm1276 = vmand %vm332, %vm1275
    %v1277 = vstv %s1269
    %v1278 = vsel %vm1276, %v1277, 0.0
    %v1279 = vadd.f32 %v1274, %v1278
    %1280 = vst [vmem:[#allocation14] sm:$0xff] %v1279
    // Predicated region
    $region58: #{tpu_custom_call.1} parent=1 // pred_check
      _
    $region59: #{tpu_custom_call.1} parent=1 // pred_check_branch
      %1282 = sbr.rel (0) target = $region61
    $region60: #{tpu_custom_call.1} parent=1 // pred_region
      %1284 = vsyncadd [#allocation4], 0
      %s1286 = sshll.u32 [#allocation14], 4
      %s1287 = int_to_ptr.vmem [resolvable:$true] %s1286
      %s1288 = sshll.u32 %s7, 4
      %s1289 = int_to_ptr.hbm [resolvable:$true] %s1288
      %1291 = dma.vmem_to_hbm [thread:$0]  %s1287, 128, %s1289, [#allocation4]
    $region61: #{tpu_custom_call.1} parent=1 // pred_fallthru
      _
    // Predicated region
    $region62: #{tpu_custom_call.1} parent=1 // pred_check
      _
    $region63: #{tpu_custom_call.1} parent=1 // pred_check_branch
      %1293 = sbr.rel (0) target = $region65
    $region64: #{tpu_custom_call.1} parent=1 // pred_region
      %1295 = dma.done [#allocation4], 128
    $region65: #{tpu_custom_call.1} parent=1 // pred_fallthru
      _
    %1296 = vsyncpa [#allocation3], 1
    %1297 = vsyncpa [#allocation6], 1
    %1298 = vsyncpa [#allocation9], 1
    %1299 = vsyncpa [#allocation12], 1
    %1300 = vsyncpa [#allocation4], 1

</llo_original>
